<compile_context>
chip_gen: v5e
topology: v5e:2x2
jax: 0.10.0
libtpu: 0.0.40
codegen_flags: <defaults>
</compile_context>

<pallas_src>
import functools

import jax
import jax.numpy as jnp
from jax.experimental import pallas as pl
from jax.experimental.pallas import tpu as pltpu


def _cdiv(a, b):
    return -(-a // b)


def _round_up(v, m):
    return _cdiv(v, m) * m


def _sublane_pack(itemsize):
    # Rows packed per vreg tile: 8 for 32-bit, 16 for bf16/f16, 32 for 8-bit.
    return {4: 8, 2: 16, 1: 32}.get(itemsize, 8)


def _tpu_budget_info():
    """Returns (physical VMEM bytes, #TensorCores) with conservative fallbacks."""
    vmem_cap = 64 << 20          # conservative default (v7x has the smallest VMEM)
    num_tc = 2                   # conservative: keeps the grid splittable
    try:
        info = pltpu.get_tpu_info()
        vmem_cap = int(info.vmem_capacity_bytes)
        found = None
        for attr in ("num_cores", "core_count", "num_tensorcores",
                     "tensorcore_count", "cores_per_chip"):
            val = getattr(info, attr, None)
            if val:
                found = int(val)
                break
        # v7x (64 MiB VMEM per TC) has 2 TensorCores; v5e/v6e (128 MiB) have 1.
        num_tc = found if found else (2 if vmem_cap <= (64 << 20) else 1)
    except Exception:
        pass
    return vmem_cap, num_tc


def _choose_block_rows(total_rows, cap_rows, pack, num_tc):
    """Largest legal block leading-dim <= cap_rows (multiple of `pack` or full)."""
    cap_rows = max(pack, int(cap_rows))
    if num_tc >= 2 and total_rows > pack:
        # Keep >= 2 (ideally >= 4) grid steps so both TensorCores get work.
        min_steps = 4 if total_rows >= 4 * pack else 2
        cap_rows = min(cap_rows, max(pack, (total_rows - 1) // (min_steps - 1)))
    if cap_rows >= total_rows:
        return total_rows                      # one full-extent block
    bm = max(pack, (cap_rows // pack) * pack)  # pack multiple -> legal partial blocks
    if bm >= total_rows:
        return total_rows
    if num_tc >= 2:
        guard = 0                              # nudge to an even step count (2 TCs)
        while (_cdiv(total_rows, bm) % 2) and bm > pack and guard < 1024:
            bm -= pack
            guard += 1
    return bm


def _nearest_upsample_kernel(x_ref, o_ref, *, scale):
    # x_ref block: (bm, W)            one original image row per block row
    # o_ref block: (bm, scale*scale*W) the `scale` identical output rows that
    #                                  row produces, concatenated along lanes
    #                                  (matches a contiguous reshape of NCHW).
    w = x_ref.shape[-1]
    sw = w * scale
    y = jnp.repeat(x_ref[...], scale, axis=-1)      # lane repeat along W -> (bm, W*s)
    for a in range(scale):                          # row repeat as `s` lane-slice
        o_ref[:, a * sw:(a + 1) * sw] = y           # stores (no s^2-wide temp)


def upsampling_layer(x, scale_factor=2, *, block_rows=None):
    """Pallas equivalent of UpsamplingLayer.forward for NCHW input."""
    if scale_factor <= 1:
        return x                        # identity, as in the PyTorch module
    if float(scale_factor) != int(scale_factor):
        raise ValueError(
            "Only integer scale factors are supported "
            f"(got {scale_factor}); non-integer nearest-neighbor scaling "
            "uses a different index mapping in PyTorch.")
    s = int(scale_factor)

    N, C, H, W = x.shape
    rows = N * C * H
    itemsize = jnp.dtype(x.dtype).itemsize
    pack = _sublane_pack(itemsize)

    # Padded VMEM bytes per block row: double-buffered input + output tiles,
    # plus in-kernel temporaries (the loaded row and its W-repeat).
    lane_in = _round_up(W, 128)
    lane_mid = _round_up(W * s, 128)
    lane_out = _round_up(W * s * s, 128)
    per_row_vmem = itemsize * (2 * lane_in + 2 * lane_out + lane_in + lane_mid)

    vmem_cap, num_tc = _tpu_budget_info()
    budget = vmem_cap // 2                      # ~50% of physical VMEM for the pipeline
    cap_rows = max(pack, budget // per_row_vmem)
    if block_rows is not None:                  # test hook / manual override
        cap_rows = min(cap_rows, max(1, int(block_rows)))
    bm = _choose_block_rows(rows, cap_rows, pack, num_tc)
    grid = (_cdiv(rows, bm),)

    resident = bm * per_row_vmem
    vmem_limit = int(min(vmem_cap - (8 << 20),
                         max(32 << 20, resident + (16 << 20))))

    x2 = x.reshape(rows, W)                     # contiguous (free) fold
    out = pl.pallas_call(
        functools.partial(_nearest_upsample_kernel, scale=s),
        out_shape=jax.ShapeDtypeStruct((rows, s * s * W), x.dtype),
        grid=grid,
        in_specs=[pl.BlockSpec((bm, W), lambda i: (i, 0))],
        out_specs=pl.BlockSpec((bm, s * s * W), lambda i: (i, 0)),
        compiler_params=pltpu.CompilerParams(
            dimension_semantics=("parallel",),
            vmem_limit_bytes=vmem_limit),
        cost_estimate=pl.CostEstimate(
            flops=0, transcendentals=0,
            bytes_accessed=int(x.size * itemsize * (1 + s * s))),
    )(x2)
    return out.reshape(N, C, H * s, W * s)


def _reference_upsample(x, scale_factor=2):
    # Plain-JAX reference of F.interpolate(..., mode='nearest') on NCHW.
    if scale_factor <= 1:
        return x
    s = int(scale_factor)
    return jnp.repeat(jnp.repeat(x, s, axis=2), s, axis=3)


if __name__ == "__main__":
    key = jax.random.PRNGKey(0)
    # UpsamplingLayer has no parameters; only the input is needed.
    x = jax.random.normal(key, (2, 4, 16, 16), dtype=jnp.float32)

    out = jax.block_until_ready(upsampling_layer(x, scale_factor=2))
    ref = _reference_upsample(x, scale_factor=2)
    assert out.shape == (2, 4, 32, 32), out.shape
    assert out.dtype == x.dtype
    assert jnp.array_equal(out, ref), "mismatch vs nearest-neighbor reference"

    # Small / odd plane count; forced small block to exercise the partial
    # last block (24 rows, 16-row blocks) on any chip.
    x2 = jax.random.normal(jax.random.PRNGKey(0), (1, 3, 8, 8), jnp.float32)
    out2 = jax.block_until_ready(upsampling_layer(x2, scale_factor=2,
                                                  block_rows=16))
    assert jnp.array_equal(out2, _reference_upsample(x2, 2))

    # Wider plane (W*s*s >= 128 -> fully lane-dense output path).
    x3 = jax.random.normal(jax.random.PRNGKey(0), (2, 3, 4, 64), jnp.float32)
    out3 = jax.block_until_ready(upsampling_layer(x3, scale_factor=2))
    assert jnp.array_equal(out3, _reference_upsample(x3, 2))

    # bf16: exercises the 16-row sublane packing in the VMEM estimate.
    x4 = jax.random.normal(jax.random.PRNGKey(0), (1, 2, 16, 16),
                           jnp.bfloat16)
    out4 = jax.block_until_ready(upsampling_layer(x4, scale_factor=2))
    assert jnp.array_equal(out4, _reference_upsample(x4, 2))

    # scale_factor <= 1 path: identity (no kernel launch, matches PyTorch).
    assert jnp.array_equal(upsampling_layer(x, scale_factor=1), x)

    print("KERNEL_OK")
</pallas_src>

<mosaic_0001>
module attributes {stable_mosaic.version = 11 : i64} {
  func.func @_nearest_upsample_kernel(%arg0: i32, %arg1: memref<40x16xf32, #tpu.memory_space<vmem>>, %arg2: memref<40x64xf32, #tpu.memory_space<vmem>>) attributes {dimension_semantics = [#tpu.dimension_semantics<parallel>], iteration_bounds = array<i64: 4>, scalar_prefetch = 0 : i64, scratch_operands = 0 : i64, tpu.core_type = #tpu.core_type<tc>, window_params = [{transform_indices = @transform_0, window_bounds = array<i64: 40, 16>}, {transform_indices = @transform_1, window_bounds = array<i64: 40, 64>}]} {
    %c0 = arith.constant 0 : index
    %c0_0 = arith.constant 0 : index
    %0 = vector.load %arg1[%c0, %c0_0] : memref<40x16xf32, #tpu.memory_space<vmem>>, vector<40x16xf32>
    %1 = vector.shape_cast %0 : vector<40x16xf32> to vector<40x16x1xf32>
    %2 = vector.broadcast %1 : vector<40x16x1xf32> to vector<40x16x2xf32>
    %3 = vector.shape_cast %2 : vector<40x16x2xf32> to vector<40x32xf32>
    %c0_1 = arith.constant 0 : index
    %c0_2 = arith.constant 0 : index
    %4 = vector.load %arg2[%c0_1, %c0_2] : memref<40x64xf32, #tpu.memory_space<vmem>>, vector<40x32xf32>
    tpu.vector_store %arg2[%c0_1, %c0_2], %3 {strides = array<i32>} : memref<40x64xf32, #tpu.memory_space<vmem>>, vector<40x32xf32>,
    %c0_3 = arith.constant 0 : index
    %c32 = arith.constant 32 : index
    %5 = vector.load %arg2[%c0_3, %c32] : memref<40x64xf32, #tpu.memory_space<vmem>>, vector<40x32xf32>
    tpu.vector_store %arg2[%c0_3, %c32], %3 {strides = array<i32>} : memref<40x64xf32, #tpu.memory_space<vmem>>, vector<40x32xf32>,
    return
  }
  func.func @transform_0(%arg0: i32) -> (i32, i32) {
    %c0_i32 = arith.constant 0 : i32
    %c0_i32_0 = arith.constant 0 : i32
    return %arg0, %c0_i32 : i32, i32
  }
  func.func @transform_1(%arg0: i32) -> (i32, i32) {
    %c0_i32 = arith.constant 0 : i32
    %c0_i32_0 = arith.constant 0 : i32
    return %arg0, %c0_i32 : i32, i32
  }
}

</mosaic_0001>

<llo_original>
// kernel: tpu_custom_call.1
$region0: #{tpu_custom_call.1}
  #allocation0 [shape = 'u32[]', space=smem, size = 0x4, offset = 0x4, fixed_abs, tag = 'smem constant byte address 0x4 - core index']
  #allocation1 [shape = 'u32[72,128]{1,0:T(1,128)}', space=vmem, size = 0x9000, scoped, tag = 'internal scratch']
  %s0 = inlined_call_operand.vmem [shape: f32[128,16], index: 0, kind: input, shape index: {}]
  %s1 = inlined_call_operand.vmem [shape: f32[128,64], index: 1, kind: output, shape index: {}]
  %s2 = sld [smem:[#allocation0]]
  $region85: #{tpu_custom_call.1} parent=0
    _
  %s4 = ssub.s32 1, %s2
  %s5 = scalar_select 0, %s4, %s2
  $region1: #{tpu_custom_call.1} parent=0
    #allocation2 [shape = 'u8[40960]{0}', space=vmem, size = 0xa000, scoped, tag = 'output window, operand 0']
    loop: start=0, step=1, limit=6
    $region2: #{tpu_custom_call.1} parent=1 // loop_pre_header
      _
    $region3: #{tpu_custom_call.1} parent=1 // loop_header
      %s7 = sphi 0, %s11
      %p8 = scmp.ge.s32.totalorder %s7, 6
      %s17 = sphi 0, %s19
      %s20 = sphi 0, %s17
      %s21 = sphi 0, %s20
      %s37 = sphi 0, %s21
      %s43 = sphi 0, %s45
      %s46 = sphi 0, %s43
      %s47 = sphi 0, %s46
      %s63 = sphi 0, %s47
    $region4: #{tpu_custom_call.1} parent=1 // loop_header_branch
      %10 = sbr.rel (%p8) target = $region8
    $region5: #{tpu_custom_call.1} parent=1 // loop_body
      %s12 = ssub.s32 %s7, 1
      %s13 = ssub.s32 %s7, 2
      %s14 = sadd.s32 %s7, 1
      %s15 = ssub.s32 %s7, %s14
      %p16 = scmp.eq.s32.totalorder %s15, 0
      %s18 = sadd.s32 %s17, 1
      %s19 = scalar_select %p16, %s17, %s18
      %p22 = pneg %p16
      %p23 = scmp.eq.s32.totalorder %s7, 3
      %p24 = por %p22, %p23
      %p25 = scmp.ne.s32.totalorder %s17, %s20
      %p26 = scmp.eq.s32.totalorder %s7, 0
      %p27 = por %p25, %p26
      %p28 = scmp.ne.s32.totalorder %s17, %s20
      %p29 = scmp.eq.s32.totalorder %s12, 3
      %p30 = por %p28, %p29
      %p31 = scmp.ne.s32.totalorder %s20, %s21
      %p32 = scmp.eq.s32.totalorder %s12, 0
      %p33 = por %p31, %p32
      %p34 = scmp.ne.s32.totalorder %s20, %s21
      %p35 = scmp.eq.s32.totalorder %s13, 3
      %p36 = por %p34, %p35
      %p38 = scmp.ne.s32.totalorder %s21, %s37
      %p39 = scmp.eq.s32.totalorder %s13, 0
      %p40 = por %p38, %p39
      %s41 = ssub.s32 %s7, %s14
      %p42 = scmp.eq.s32.totalorder %s41, 0
      %s44 = sadd.s32 %s43, 1
      %s45 = scalar_select %p42, %s43, %s44
      %p48 = pneg %p42
      %p49 = scmp.eq.s32.totalorder %s7, 3
      %p50 = por %p48, %p49
      %p51 = scmp.ne.s32.totalorder %s43, %s46
      %p52 = scmp.eq.s32.totalorder %s7, 0
      %p53 = por %p51, %p52
      %p54 = scmp.ne.s32.totalorder %s43, %s46
      %p55 = scmp.eq.s32.totalorder %s12, 3
      %p56 = por %p54, %p55
      %p57 = scmp.ne.s32.totalorder %s46, %s47
      %p58 = scmp.eq.s32.totalorder %s12, 0
      %p59 = por %p57, %p58
      %p60 = scmp.ne.s32.totalorder %s46, %s47
      %p61 = scmp.eq.s32.totalorder %s13, 3
      %p62 = por %p60, %p61
      %p64 = scmp.ne.s32.totalorder %s47, %s63
      %p65 = scmp.eq.s32.totalorder %s13, 0
      %p66 = por %p64, %p65
      %p67 = scmp.le.s32.totalorder 1, %s7
      %p68 = scmp.lt.s32.totalorder %s7, 5
      %p69 = pnand %p67, %p68
      %p70 = pneg %p69
      // Predicated region
      $region9: #{tpu_custom_call.1} parent=5 // pred_check
        _
      $region10: #{tpu_custom_call.1} parent=5 // pred_check_branch
        %72 = sbr.rel (%p69) target = $region12
      $region11: #{tpu_custom_call.1} parent=5 // pred_region
        %s73 = ssub.s32 %s7, 1
      $region12: #{tpu_custom_call.1} parent=5 // pred_fallthru
        _
      %p74 = scmp.lt.s32.totalorder %s7, 4
      // Predicated region
      $region13: #{tpu_custom_call.1} parent=5 // pred_check
        %p75 = pneg %p74
      $region14: #{tpu_custom_call.1} parent=5 // pred_check_branch
        %77 = sbr.rel (%p75) target = $region16
      $region15: #{tpu_custom_call.1} parent=5 // pred_region
        // Predicated region
        $region17: #{tpu_custom_call.1} parent=15 // pred_check
          %p78 = pneg %p27
        $region18: #{tpu_custom_call.1} parent=15 // pred_check_branch
          %80 = sbr.rel (%p78) target = $region20
        $region19: #{tpu_custom_call.1} parent=15 // pred_region
          %s81 = smul.u32 5, %s7
          %s82 = ssub.s32 16, %s81
          %p83 = scmp.lt.s32.totalorder %s82, 5
          %s84 = scalar_select %p83, %s82, 5
          %s85 = smul.u32 8, %s84
          %p86 = scmp.lt.s32.totalorder %s81, 15
          %s87 = scalar_select %p86, %s81, 15
          %s88 = smul.addr %s87, 8
          %s89 = scalar_lea.vmem %s0, %s88
          %s90 = smul.u32 5, %s7
          %s91 = ssub.s32 16, %s90
          %p92 = scmp.lt.s32.totalorder %s91, 5
          %s93 = scalar_select %p92, %s91, 5
          %s94 = smul.u32 8, %s93
        $region20: #{tpu_custom_call.1} parent=15 // pred_fallthru
          _
      $region16: #{tpu_custom_call.1} parent=5 // pred_fallthru
        _
      %p95 = scmp.le.s32.totalorder 1, %s7
      %p96 = scmp.lt.s32.totalorder %s7, 5
      %p97 = pnand %p95, %p96
      %p98 = pneg %p97
      // Predicated region
      $region21: #{tpu_custom_call.1} parent=5 // pred_check
        _
      $region22: #{tpu_custom_call.1} parent=5 // pred_check_branch
        %100 = sbr.rel (%p97) target = $region24
      $region23: #{tpu_custom_call.1} parent=5 // pred_region
        %s101 = ssub.s32 %s7, 1
        %s102 = smul.u32 5, %s12
        %s103 = ssub.s32 16, %s102
        %p104 = scmp.lt.s32.totalorder %s103, 5
        %s105 = scalar_select %p104, %s103, 5
        %s106 = smul.u32 8, %s105
        %p107 = scmp.lt.s32.totalorder %s102, 15
        %s108 = scalar_select %p107, %s102, 15
        %s109 = smul.addr %s108, 8
        %s110 = scalar_lea.vmem %s0, %s109
        %p111 = pneg %p33
        %p112 = pneg %p30
        %p113 = pneg %p59
        %p114 = pneg %p56
        %s115 = sand.u32 %s46, 1
        %s116 = sand.u32 %s46, 1
        %s117 = smul.addr %s116, 40
        %s118 = scalar_lea.vmem [#allocation2], %s117
        %s119 = smul.u32 5, %s12
        %s120 = ssub.s32 16, %s119
        %p121 = scmp.lt.s32.totalorder %s120, 5
        %s122 = scalar_select %p121, %s120, 5
        %s123 = smul.u32 8, %s122
        %p124 = scmp.lt.s32.totalorder %s119, 15
        %s125 = scalar_select %p124, %s119, 15
        %s126 = smul.addr %s125, 8
        %s127 = scalar_lea.vmem %s0, %s126
        %s128 = smul.u32 5, %s12
        %s129 = ssub.s32 16, %s128
        %p130 = scmp.lt.s32.totalorder %s129, 5
        %s131 = scalar_select %p130, %s129, 5
        %s132 = smul.u32 8, %s131
        %s133 = smul.u32 5, %s12
        %s134 = ssub.s32 16, %s133
        %p135 = scmp.lt.s32.totalorder %s134, 5
        %s136 = scalar_select %p135, %s134, 5
        %s137 = smul.u32 8, %s136
        %v138 = vld [vmem:[%s127] sm:$0xff]
        %v139 = vld [vmem:[%s127 + $0x8] sm:$0xff]
        %v140 = vld [vmem:[%s127 + $0x10] sm:$0xff]
        %v141 = vld [vmem:[%s127 + $0x18] sm:$0xff]
        %v142 = vld [vmem:[%s127 + $0x20] sm:$0xff]
        %v143 = vperm.slane %v138, 0
        %v144 = vlaneseq
        %v145 = vshrl.u32 %v144, 7
        %147 = vset.pattern.permute.xlu0 %v145
        %148 = vperm.xlu0 %147, %v143
        %v149 = vpop.permute.xlu0 %148
        %v150 = vlaneseq
        %v151 = vshrl.u32 %v150, 7
        %v152 = vadd.s32 %v151, 8
        %153 = vset.pattern.permute.xlu0 %v152
        %154 = vperm.xlu0 %153, %v143
        %v155 = vpop.permute.xlu0 %154
        %v156 = vperm.slane %v138, 1
        %v157 = vlaneseq
        %v158 = vshrl.u32 %v157, 7
        %160 = vset.pattern.permute.xlu0 %v158
        %161 = vperm.xlu0 %160, %v156
        %v162 = vpop.permute.xlu0 %161
        %v163 = vlaneseq
        %v164 = vshrl.u32 %v163, 7
        %v165 = vadd.s32 %v164, 8
        %166 = vset.pattern.permute.xlu0 %v165
        %167 = vperm.xlu0 %166, %v156
        %v168 = vpop.permute.xlu0 %167
        %v169 = vperm.slane %v138, 2
        %v170 = vlaneseq
        %v171 = vshrl.u32 %v170, 7
        %173 = vset.pattern.permute.xlu0 %v171
        %174 = vperm.xlu0 %173, %v169
        %v175 = vpop.permute.xlu0 %174
        %v176 = vlaneseq
        %v177 = vshrl.u32 %v176, 7
        %v178 = vadd.s32 %v177, 8
        %179 = vset.pattern.permute.xlu0 %v178
        %180 = vperm.xlu0 %179, %v169
        %v181 = vpop.permute.xlu0 %180
        %v182 = vperm.slane %v138, 3
        %v183 = vlaneseq
        %v184 = vshrl.u32 %v183, 7
        %186 = vset.pattern.permute.xlu0 %v184
        %187 = vperm.xlu0 %186, %v182
        %v188 = vpop.permute.xlu0 %187
        %v189 = vlaneseq
        %v190 = vshrl.u32 %v189, 7
        %v191 = vadd.s32 %v190, 8
        %192 = vset.pattern.permute.xlu0 %v191
        %193 = vperm.xlu0 %192, %v182
        %v194 = vpop.permute.xlu0 %193
        %v195 = vperm.slane %v138, 4
        %v196 = vlaneseq
        %v197 = vshrl.u32 %v196, 7
        %199 = vset.pattern.permute.xlu0 %v197
        %200 = vperm.xlu0 %199, %v195
        %v201 = vpop.permute.xlu0 %200
        %v202 = vlaneseq
        %v203 = vshrl.u32 %v202, 7
        %v204 = vadd.s32 %v203, 8
        %205 = vset.pattern.permute.xlu0 %v204
        %206 = vperm.xlu0 %205, %v195
        %v207 = vpop.permute.xlu0 %206
        %v208 = vperm.slane %v138, 5
        %v209 = vlaneseq
        %v210 = vshrl.u32 %v209, 7
        %212 = vset.pattern.permute.xlu0 %v210
        %213 = vperm.xlu0 %212, %v208
        %v214 = vpop.permute.xlu0 %213
        %v215 = vlaneseq
        %v216 = vshrl.u32 %v215, 7
        %v217 = vadd.s32 %v216, 8
        %218 = vset.pattern.permute.xlu0 %v217
        %219 = vperm.xlu0 %218, %v208
        %v220 = vpop.permute.xlu0 %219
        %v221 = vperm.slane %v138, 6
        %v222 = vlaneseq
        %v223 = vshrl.u32 %v222, 7
        %225 = vset.pattern.permute.xlu0 %v223
        %226 = vperm.xlu0 %225, %v221
        %v227 = vpop.permute.xlu0 %226
        %v228 = vlaneseq
        %v229 = vshrl.u32 %v228, 7
        %v230 = vadd.s32 %v229, 8
        %231 = vset.pattern.permute.xlu0 %v230
        %232 = vperm.xlu0 %231, %v221
        %v233 = vpop.permute.xlu0 %232
        %v234 = vperm.slane %v138, 7
        %v235 = vlaneseq
        %v236 = vshrl.u32 %v235, 7
        %238 = vset.pattern.permute.xlu0 %v236
        %239 = vperm.xlu0 %238, %v234
        %v240 = vpop.permute.xlu0 %239
        %v241 = vlaneseq
        %v242 = vshrl.u32 %v241, 7
        %v243 = vadd.s32 %v242, 8
        %244 = vset.pattern.permute.xlu0 %v243
        %245 = vperm.xlu0 %244, %v234
        %v246 = vpop.permute.xlu0 %245
        %v247 = vperm.slane %v139, 0
        %v248 = vlaneseq
        %v249 = vshrl.u32 %v248, 7
        %251 = vset.pattern.permute.xlu0 %v249
        %252 = vperm.xlu0 %251, %v247
        %v253 = vpop.permute.xlu0 %252
        %v254 = vlaneseq
        %v255 = vshrl.u32 %v254, 7
        %v256 = vadd.s32 %v255, 8
        %257 = vset.pattern.permute.xlu0 %v256
        %258 = vperm.xlu0 %257, %v247
        %v259 = vpop.permute.xlu0 %258
        %v260 = vperm.slane %v139, 1
        %v261 = vlaneseq
        %v262 = vshrl.u32 %v261, 7
        %264 = vset.pattern.permute.xlu0 %v262
        %265 = vperm.xlu0 %264, %v260
        %v266 = vpop.permute.xlu0 %265
        %v267 = vlaneseq
        %v268 = vshrl.u32 %v267, 7
        %v269 = vadd.s32 %v268, 8
        %270 = vset.pattern.permute.xlu0 %v269
        %271 = vperm.xlu0 %270, %v260
        %v272 = vpop.permute.xlu0 %271
        %v273 = vperm.slane %v139, 2
        %v274 = vlaneseq
        %v275 = vshrl.u32 %v274, 7
        %277 = vset.pattern.permute.xlu0 %v275
        %278 = vperm.xlu0 %277, %v273
        %v279 = vpop.permute.xlu0 %278
        %v280 = vlaneseq
        %v281 = vshrl.u32 %v280, 7
        %v282 = vadd.s32 %v281, 8
        %283 = vset.pattern.permute.xlu0 %v282
        %284 = vperm.xlu0 %283, %v273
        %v285 = vpop.permute.xlu0 %284
        %v286 = vperm.slane %v139, 3
        %v287 = vlaneseq
        %v288 = vshrl.u32 %v287, 7
        %290 = vset.pattern.permute.xlu0 %v288
        %291 = vperm.xlu0 %290, %v286
        %v292 = vpop.permute.xlu0 %291
        %v293 = vlaneseq
        %v294 = vshrl.u32 %v293, 7
        %v295 = vadd.s32 %v294, 8
        %296 = vset.pattern.permute.xlu0 %v295
        %297 = vperm.xlu0 %296, %v286
        %v298 = vpop.permute.xlu0 %297
        %v299 = vperm.slane %v139, 4
        %v300 = vlaneseq
        %v301 = vshrl.u32 %v300, 7
        %303 = vset.pattern.permute.xlu0 %v301
        %304 = vperm.xlu0 %303, %v299
        %v305 = vpop.permute.xlu0 %304
        %v306 = vlaneseq
        %v307 = vshrl.u32 %v306, 7
        %v308 = vadd.s32 %v307, 8
        %309 = vset.pattern.permute.xlu0 %v308
        %310 = vperm.xlu0 %309, %v299
        %v311 = vpop.permute.xlu0 %310
        %v312 = vperm.slane %v139, 5
        %v313 = vlaneseq
        %v314 = vshrl.u32 %v313, 7
        %316 = vset.pattern.permute.xlu0 %v314
        %317 = vperm.xlu0 %316, %v312
        %v318 = vpop.permute.xlu0 %317
        %v319 = vlaneseq
        %v320 = vshrl.u32 %v319, 7
        %v321 = vadd.s32 %v320, 8
        %322 = vset.pattern.permute.xlu0 %v321
        %323 = vperm.xlu0 %322, %v312
        %v324 = vpop.permute.xlu0 %323
        %v325 = vperm.slane %v139, 6
        %v326 = vlaneseq
        %v327 = vshrl.u32 %v326, 7
        %329 = vset.pattern.permute.xlu0 %v327
        %330 = vperm.xlu0 %329, %v325
        %v331 = vpop.permute.xlu0 %330
        %v332 = vlaneseq
        %v333 = vshrl.u32 %v332, 7
        %v334 = vadd.s32 %v333, 8
        %335 = vset.pattern.permute.xlu0 %v334
        %336 = vperm.xlu0 %335, %v325
        %v337 = vpop.permute.xlu0 %336
        %v338 = vperm.slane %v139, 7
        %v339 = vlaneseq
        %v340 = vshrl.u32 %v339, 7
        %342 = vset.pattern.permute.xlu0 %v340
        %343 = vperm.xlu0 %342, %v338
        %v344 = vpop.permute.xlu0 %343
        %v345 = vlaneseq
        %v346 = vshrl.u32 %v345, 7
        %v347 = vadd.s32 %v346, 8
        %348 = vset.pattern.permute.xlu0 %v347
        %349 = vperm.xlu0 %348, %v338
        %v350 = vpop.permute.xlu0 %349
        %v351 = vperm.slane %v140, 0
        %v352 = vlaneseq
        %v353 = vshrl.u32 %v352, 7
        %355 = vset.pattern.permute.xlu0 %v353
        %356 = vperm.xlu0 %355, %v351
        %v357 = vpop.permute.xlu0 %356
        %v358 = vlaneseq
        %v359 = vshrl.u32 %v358, 7
        %v360 = vadd.s32 %v359, 8
        %361 = vset.pattern.permute.xlu0 %v360
        %362 = vperm.xlu0 %361, %v351
        %v363 = vpop.permute.xlu0 %362
        %v364 = vperm.slane %v140, 1
        %v365 = vlaneseq
        %v366 = vshrl.u32 %v365, 7
        %368 = vset.pattern.permute.xlu0 %v366
        %369 = vperm.xlu0 %368, %v364
        %v370 = vpop.permute.xlu0 %369
        %v371 = vlaneseq
        %v372 = vshrl.u32 %v371, 7
        %v373 = vadd.s32 %v372, 8
        %374 = vset.pattern.permute.xlu0 %v373
        %375 = vperm.xlu0 %374, %v364
        %v376 = vpop.permute.xlu0 %375
        %v377 = vperm.slane %v140, 2
        %v378 = vlaneseq
        %v379 = vshrl.u32 %v378, 7
        %381 = vset.pattern.permute.xlu0 %v379
        %382 = vperm.xlu0 %381, %v377
        %v383 = vpop.permute.xlu0 %382
        %v384 = vlaneseq
        %v385 = vshrl.u32 %v384, 7
        %v386 = vadd.s32 %v385, 8
        %387 = vset.pattern.permute.xlu0 %v386
        %388 = vperm.xlu0 %387, %v377
        %v389 = vpop.permute.xlu0 %388
        %v390 = vperm.slane %v140, 3
        %v391 = vlaneseq
        %v392 = vshrl.u32 %v391, 7
        %394 = vset.pattern.permute.xlu0 %v392
        %395 = vperm.xlu0 %394, %v390
        %v396 = vpop.permute.xlu0 %395
        %v397 = vlaneseq
        %v398 = vshrl.u32 %v397, 7
        %v399 = vadd.s32 %v398, 8
        %400 = vset.pattern.permute.xlu0 %v399
        %401 = vperm.xlu0 %400, %v390
        %v402 = vpop.permute.xlu0 %401
        %v403 = vperm.slane %v140, 4
        %v404 = vlaneseq
        %v405 = vshrl.u32 %v404, 7
        %407 = vset.pattern.permute.xlu0 %v405
        %408 = vperm.xlu0 %407, %v403
        %v409 = vpop.permute.xlu0 %408
        %v410 = vlaneseq
        %v411 = vshrl.u32 %v410, 7
        %v412 = vadd.s32 %v411, 8
        %413 = vset.pattern.permute.xlu0 %v412
        %414 = vperm.xlu0 %413, %v403
        %v415 = vpop.permute.xlu0 %414
        %v416 = vperm.slane %v140, 5
        %v417 = vlaneseq
        %v418 = vshrl.u32 %v417, 7
        %420 = vset.pattern.permute.xlu0 %v418
        %421 = vperm.xlu0 %420, %v416
        %v422 = vpop.permute.xlu0 %421
        %v423 = vlaneseq
        %v424 = vshrl.u32 %v423, 7
        %v425 = vadd.s32 %v424, 8
        %426 = vset.pattern.permute.xlu0 %v425
        %427 = vperm.xlu0 %426, %v416
        %v428 = vpop.permute.xlu0 %427
        %v429 = vperm.slane %v140, 6
        %v430 = vlaneseq
        %v431 = vshrl.u32 %v430, 7
        %433 = vset.pattern.permute.xlu0 %v431
        %434 = vperm.xlu0 %433, %v429
        %v435 = vpop.permute.xlu0 %434
        %v436 = vlaneseq
        %v437 = vshrl.u32 %v436, 7
        %v438 = vadd.s32 %v437, 8
        %439 = vset.pattern.permute.xlu0 %v438
        %440 = vperm.xlu0 %439, %v429
        %v441 = vpop.permute.xlu0 %440
        %v442 = vperm.slane %v140, 7
        %v443 = vlaneseq
        %v444 = vshrl.u32 %v443, 7
        %446 = vset.pattern.permute.xlu0 %v444
        %447 = vperm.xlu0 %446, %v442
        %v448 = vpop.permute.xlu0 %447
        %v449 = vlaneseq
        %v450 = vshrl.u32 %v449, 7
        %v451 = vadd.s32 %v450, 8
        %452 = vset.pattern.permute.xlu0 %v451
        %453 = vperm.xlu0 %452, %v442
        %v454 = vpop.permute.xlu0 %453
        %v455 = vperm.slane %v141, 0
        %v456 = vlaneseq
        %v457 = vshrl.u32 %v456, 7
        %459 = vset.pattern.permute.xlu0 %v457
        %460 = vperm.xlu0 %459, %v455
        %v461 = vpop.permute.xlu0 %460
        %v462 = vlaneseq
        %v463 = vshrl.u32 %v462, 7
        %v464 = vadd.s32 %v463, 8
        %465 = vset.pattern.permute.xlu0 %v464
        %466 = vperm.xlu0 %465, %v455
        %v467 = vpop.permute.xlu0 %466
        %v468 = vperm.slane %v141, 1
        %v469 = vlaneseq
        %v470 = vshrl.u32 %v469, 7
        %472 = vset.pattern.permute.xlu0 %v470
        %473 = vperm.xlu0 %472, %v468
        %v474 = vpop.permute.xlu0 %473
        %v475 = vlaneseq
        %v476 = vshrl.u32 %v475, 7
        %v477 = vadd.s32 %v476, 8
        %478 = vset.pattern.permute.xlu0 %v477
        %479 = vperm.xlu0 %478, %v468
        %v480 = vpop.permute.xlu0 %479
        %v481 = vperm.slane %v141, 2
        %v482 = vlaneseq
        %v483 = vshrl.u32 %v482, 7
        %485 = vset.pattern.permute.xlu0 %v483
        %486 = vperm.xlu0 %485, %v481
        %v487 = vpop.permute.xlu0 %486
        %v488 = vlaneseq
        %v489 = vshrl.u32 %v488, 7
        %v490 = vadd.s32 %v489, 8
        %491 = vset.pattern.permute.xlu0 %v490
        %492 = vperm.xlu0 %491, %v481
        %v493 = vpop.permute.xlu0 %492
        %v494 = vperm.slane %v141, 3
        %v495 = vlaneseq
        %v496 = vshrl.u32 %v495, 7
        %498 = vset.pattern.permute.xlu0 %v496
        %499 = vperm.xlu0 %498, %v494
        %v500 = vpop.permute.xlu0 %499
        %v501 = vlaneseq
        %v502 = vshrl.u32 %v501, 7
        %v503 = vadd.s32 %v502, 8
        %504 = vset.pattern.permute.xlu0 %v503
        %505 = vperm.xlu0 %504, %v494
        %v506 = vpop.permute.xlu0 %505
        %v507 = vperm.slane %v141, 4
        %v508 = vlaneseq
        %v509 = vshrl.u32 %v508, 7
        %511 = vset.pattern.permute.xlu0 %v509
        %512 = vperm.xlu0 %511, %v507
        %v513 = vpop.permute.xlu0 %512
        %v514 = vlaneseq
        %v515 = vshrl.u32 %v514, 7
        %v516 = vadd.s32 %v515, 8
        %517 = vset.pattern.permute.xlu0 %v516
        %518 = vperm.xlu0 %517, %v507
        %v519 = vpop.permute.xlu0 %518
        %v520 = vperm.slane %v141, 5
        %v521 = vlaneseq
        %v522 = vshrl.u32 %v521, 7
        %524 = vset.pattern.permute.xlu0 %v522
        %525 = vperm.xlu0 %524, %v520
        %v526 = vpop.permute.xlu0 %525
        %v527 = vlaneseq
        %v528 = vshrl.u32 %v527, 7
        %v529 = vadd.s32 %v528, 8
        %530 = vset.pattern.permute.xlu0 %v529
        %531 = vperm.xlu0 %530, %v520
        %v532 = vpop.permute.xlu0 %531
        %v533 = vperm.slane %v141, 6
        %v534 = vlaneseq
        %v535 = vshrl.u32 %v534, 7
        %537 = vset.pattern.permute.xlu0 %v535
        %538 = vperm.xlu0 %537, %v533
        %v539 = vpop.permute.xlu0 %538
        %v540 = vlaneseq
        %v541 = vshrl.u32 %v540, 7
        %v542 = vadd.s32 %v541, 8
        %543 = vset.pattern.permute.xlu0 %v542
        %544 = vperm.xlu0 %543, %v533
        %v545 = vpop.permute.xlu0 %544
        %v546 = vperm.slane %v141, 7
        %v547 = vlaneseq
        %v548 = vshrl.u32 %v547, 7
        %550 = vset.pattern.permute.xlu0 %v548
        %551 = vperm.xlu0 %550, %v546
        %v552 = vpop.permute.xlu0 %551
        %v553 = vlaneseq
        %v554 = vshrl.u32 %v553, 7
        %v555 = vadd.s32 %v554, 8
        %556 = vset.pattern.permute.xlu0 %v555
        %557 = vperm.xlu0 %556, %v546
        %v558 = vpop.permute.xlu0 %557
        %v559 = vperm.slane %v142, 0
        %v560 = vlaneseq
        %v561 = vshrl.u32 %v560, 7
        %563 = vset.pattern.permute.xlu0 %v561
        %564 = vperm.xlu0 %563, %v559
        %v565 = vpop.permute.xlu0 %564
        %v566 = vlaneseq
        %v567 = vshrl.u32 %v566, 7
        %v568 = vadd.s32 %v567, 8
        %569 = vset.pattern.permute.xlu0 %v568
        %570 = vperm.xlu0 %569, %v559
        %v571 = vpop.permute.xlu0 %570
        %v572 = vperm.slane %v142, 1
        %v573 = vlaneseq
        %v574 = vshrl.u32 %v573, 7
        %576 = vset.pattern.permute.xlu0 %v574
        %577 = vperm.xlu0 %576, %v572
        %v578 = vpop.permute.xlu0 %577
        %v579 = vlaneseq
        %v580 = vshrl.u32 %v579, 7
        %v581 = vadd.s32 %v580, 8
        %582 = vset.pattern.permute.xlu0 %v581
        %583 = vperm.xlu0 %582, %v572
        %v584 = vpop.permute.xlu0 %583
        %v585 = vperm.slane %v142, 2
        %v586 = vlaneseq
        %v587 = vshrl.u32 %v586, 7
        %589 = vset.pattern.permute.xlu0 %v587
        %590 = vperm.xlu0 %589, %v585
        %v591 = vpop.permute.xlu0 %590
        %v592 = vlaneseq
        %v593 = vshrl.u32 %v592, 7
        %v594 = vadd.s32 %v593, 8
        %595 = vset.pattern.permute.xlu0 %v594
        %596 = vperm.xlu0 %595, %v585
        %v597 = vpop.permute.xlu0 %596
        %v598 = vperm.slane %v142, 3
        %v599 = vlaneseq
        %v600 = vshrl.u32 %v599, 7
        %602 = vset.pattern.permute.xlu0 %v600
        %603 = vperm.xlu0 %602, %v598
        %v604 = vpop.permute.xlu0 %603
        %v605 = vlaneseq
        %v606 = vshrl.u32 %v605, 7
        %v607 = vadd.s32 %v606, 8
        %608 = vset.pattern.permute.xlu0 %v607
        %609 = vperm.xlu0 %608, %v598
        %v610 = vpop.permute.xlu0 %609
        %v611 = vperm.slane %v142, 4
        %v612 = vlaneseq
        %v613 = vshrl.u32 %v612, 7
        %615 = vset.pattern.permute.xlu0 %v613
        %616 = vperm.xlu0 %615, %v611
        %v617 = vpop.permute.xlu0 %616
        %v618 = vlaneseq
        %v619 = vshrl.u32 %v618, 7
        %v620 = vadd.s32 %v619, 8
        %621 = vset.pattern.permute.xlu0 %v620
        %622 = vperm.xlu0 %621, %v611
        %v623 = vpop.permute.xlu0 %622
        %v624 = vperm.slane %v142, 5
        %v625 = vlaneseq
        %v626 = vshrl.u32 %v625, 7
        %628 = vset.pattern.permute.xlu0 %v626
        %629 = vperm.xlu0 %628, %v624
        %v630 = vpop.permute.xlu0 %629
        %v631 = vlaneseq
        %v632 = vshrl.u32 %v631, 7
        %v633 = vadd.s32 %v632, 8
        %634 = vset.pattern.permute.xlu0 %v633
        %635 = vperm.xlu0 %634, %v624
        %v636 = vpop.permute.xlu0 %635
        %v637 = vperm.slane %v142, 6
        %v638 = vlaneseq
        %v639 = vshrl.u32 %v638, 7
        %641 = vset.pattern.permute.xlu0 %v639
        %642 = vperm.xlu0 %641, %v637
        %v643 = vpop.permute.xlu0 %642
        %v644 = vlaneseq
        %v645 = vshrl.u32 %v644, 7
        %v646 = vadd.s32 %v645, 8
        %647 = vset.pattern.permute.xlu0 %v646
        %648 = vperm.xlu0 %647, %v637
        %v649 = vpop.permute.xlu0 %648
        %v650 = vperm.slane %v142, 7
        %v651 = vlaneseq
        %v652 = vshrl.u32 %v651, 7
        %654 = vset.pattern.permute.xlu0 %v652
        %655 = vperm.xlu0 %654, %v650
        %v656 = vpop.permute.xlu0 %655
        %v657 = vlaneseq
        %v658 = vshrl.u32 %v657, 7
        %v659 = vadd.s32 %v658, 8
        %660 = vset.pattern.permute.xlu0 %v659
        %661 = vperm.xlu0 %660, %v650
        %v662 = vpop.permute.xlu0 %661
        %v663 = vrot.slane %v175, 4
        %vm664 = vcmask 1047556
        %v665 = vsel %vm664, %v663, %v149
        %v666 = vrot.slane %v149, 4
        %v667 = vsel %vm664, %v175, %v666
        %v669 = vunpack.c.l.s4 1983009808
        %v670 = vunpack.c.0.s8 %v669
        %v671 = vperm.slane %v665, %v670
        %v673 = vunpack.c.l.s4 1983009808
        %v674 = vunpack.c.0.s8 %v673
        %v675 = vperm.slane %v667, %v674
        %v676 = vrot.slane %v188, 4
        %v677 = vsel %vm664, %v676, %v162
        %v678 = vrot.slane %v162, 4
        %v679 = vsel %vm664, %v188, %v678
        %v681 = vunpack.c.l.s4 1983009808
        %v682 = vunpack.c.0.s8 %v681
        %v683 = vperm.slane %v677, %v682
        %v685 = vunpack.c.l.s4 1983009808
        %v686 = vunpack.c.0.s8 %v685
        %v687 = vperm.slane %v679, %v686
        %v688 = vrot.slane %v227, 4
        %v689 = vsel %vm664, %v688, %v201
        %v690 = vrot.slane %v201, 4
        %v691 = vsel %vm664, %v227, %v690
        %v693 = vunpack.c.l.s4 1983009808
        %v694 = vunpack.c.0.s8 %v693
        %v695 = vperm.slane %v689, %v694
        %v697 = vunpack.c.l.s4 1983009808
        %v698 = vunpack.c.0.s8 %v697
        %v699 = vperm.slane %v691, %v698
        %v700 = vrot.slane %v240, 4
        %v701 = vsel %vm664, %v700, %v214
        %v702 = vrot.slane %v214, 4
        %v703 = vsel %vm664, %v240, %v702
        %v705 = vunpack.c.l.s4 1983009808
        %v706 = vunpack.c.0.s8 %v705
        %v707 = vperm.slane %v701, %v706
        %v709 = vunpack.c.l.s4 1983009808
        %v710 = vunpack.c.0.s8 %v709
        %v711 = vperm.slane %v703, %v710
        %v712 = vrot.slane %v683, 4
        %v713 = vsel %vm664, %v712, %v671
        %v714 = vrot.slane %v671, 4
        %v715 = vsel %vm664, %v683, %v714
        %v717 = vunpack.c.l.s4 1934713408
        %v718 = vunpack.c.0.s8 %v717
        %v719 = vperm.slane %v713, %v718
        %v721 = vunpack.c.l.s4 1934713408
        %v722 = vunpack.c.0.s8 %v721
        %v723 = vperm.slane %v715, %v722
        %v724 = vrot.slane %v687, 4
        %v725 = vsel %vm664, %v724, %v675
        %v726 = vrot.slane %v675, 4
        %v727 = vsel %vm664, %v687, %v726
        %v729 = vunpack.c.l.s4 1934713408
        %v730 = vunpack.c.0.s8 %v729
        %v731 = vperm.slane %v725, %v730
        %v733 = vunpack.c.l.s4 1934713408
        %v734 = vunpack.c.0.s8 %v733
        %v735 = vperm.slane %v727, %v734
        %v736 = vrot.slane %v707, 4
        %v737 = vsel %vm664, %v736, %v695
        %v738 = vrot.slane %v695, 4
        %v739 = vsel %vm664, %v707, %v738
        %v741 = vunpack.c.l.s4 1934713408
        %v742 = vunpack.c.0.s8 %v741
        %v743 = vperm.slane %v737, %v742
        %v745 = vunpack.c.l.s4 1934713408
        %v746 = vunpack.c.0.s8 %v745
        %v747 = vperm.slane %v739, %v746
        %v748 = vrot.slane %v711, 4
        %v749 = vsel %vm664, %v748, %v699
        %v750 = vrot.slane %v699, 4
        %v751 = vsel %vm664, %v711, %v750
        %v753 = vunpack.c.l.s4 1934713408
        %v754 = vunpack.c.0.s8 %v753
        %v755 = vperm.slane %v749, %v754
        %v757 = vunpack.c.l.s4 1934713408
        %v758 = vunpack.c.0.s8 %v757
        %v759 = vperm.slane %v751, %v758
        %v760 = vrot.slane %v743, 4
        %v761 = vsel %vm664, %v760, %v719
        %v762 = vrot.slane %v719, 4
        %v763 = vsel %vm664, %v743, %v762
        %v764 = vrot.slane %v747, 4
        %v765 = vsel %vm664, %v764, %v723
        %v766 = vrot.slane %v723, 4
        %v767 = vsel %vm664, %v747, %v766
        %v768 = vrot.slane %v755, 4
        %v769 = vsel %vm664, %v768, %v731
        %v770 = vrot.slane %v731, 4
        %v771 = vsel %vm664, %v755, %v770
        %v772 = vrot.slane %v759, 4
        %v773 = vsel %vm664, %v772, %v735
        %v774 = vrot.slane %v735, 4
        %v775 = vsel %vm664, %v759, %v774
        %v776 = vrot.slane %v279, 4
        %v777 = vsel %vm664, %v776, %v253
        %v778 = vrot.slane %v253, 4
        %v779 = vsel %vm664, %v279, %v778
        %v781 = vunpack.c.l.s4 1983009808
        %v782 = vunpack.c.0.s8 %v781
        %v783 = vperm.slane %v777, %v782
        %v785 = vunpack.c.l.s4 1983009808
        %v786 = vunpack.c.0.s8 %v785
        %v787 = vperm.slane %v779, %v786
        %v788 = vrot.slane %v292, 4
        %v789 = vsel %vm664, %v788, %v266
        %v790 = vrot.slane %v266, 4
        %v791 = vsel %vm664, %v292, %v790
        %v793 = vunpack.c.l.s4 1983009808
        %v794 = vunpack.c.0.s8 %v793
        %v795 = vperm.slane %v789, %v794
        %v797 = vunpack.c.l.s4 1983009808
        %v798 = vunpack.c.0.s8 %v797
        %v799 = vperm.slane %v791, %v798
        %v800 = vrot.slane %v331, 4
        %v801 = vsel %vm664, %v800, %v305
        %v802 = vrot.slane %v305, 4
        %v803 = vsel %vm664, %v331, %v802
        %v805 = vunpack.c.l.s4 1983009808
        %v806 = vunpack.c.0.s8 %v805
        %v807 = vperm.slane %v801, %v806
        %v809 = vunpack.c.l.s4 1983009808
        %v810 = vunpack.c.0.s8 %v809
        %v811 = vperm.slane %v803, %v810
        %v812 = vrot.slane %v344, 4
        %v813 = vsel %vm664, %v812, %v318
        %v814 = vrot.slane %v318, 4
        %v815 = vsel %vm664, %v344, %v814
        %v817 = vunpack.c.l.s4 1983009808
        %v818 = vunpack.c.0.s8 %v817
        %v819 = vperm.slane %v813, %v818
        %v821 = vunpack.c.l.s4 1983009808
        %v822 = vunpack.c.0.s8 %v821
        %v823 = vperm.slane %v815, %v822
        %v824 = vrot.slane %v795, 4
        %v825 = vsel %vm664, %v824, %v783
        %v826 = vrot.slane %v783, 4
        %v827 = vsel %vm664, %v795, %v826
        %v829 = vunpack.c.l.s4 1934713408
        %v830 = vunpack.c.0.s8 %v829
        %v831 = vperm.slane %v825, %v830
        %v833 = vunpack.c.l.s4 1934713408
        %v834 = vunpack.c.0.s8 %v833
        %v835 = vperm.slane %v827, %v834
        %v836 = vrot.slane %v799, 4
        %v837 = vsel %vm664, %v836, %v787
        %v838 = vrot.slane %v787, 4
        %v839 = vsel %vm664, %v799, %v838
        %v841 = vunpack.c.l.s4 1934713408
        %v842 = vunpack.c.0.s8 %v841
        %v843 = vperm.slane %v837, %v842
        %v845 = vunpack.c.l.s4 1934713408
        %v846 = vunpack.c.0.s8 %v845
        %v847 = vperm.slane %v839, %v846
        %v848 = vrot.slane %v819, 4
        %v849 = vsel %vm664, %v848, %v807
        %v850 = vrot.slane %v807, 4
        %v851 = vsel %vm664, %v819, %v850
        %v853 = vunpack.c.l.s4 1934713408
        %v854 = vunpack.c.0.s8 %v853
        %v855 = vperm.slane %v849, %v854
        %v857 = vunpack.c.l.s4 1934713408
        %v858 = vunpack.c.0.s8 %v857
        %v859 = vperm.slane %v851, %v858
        %v860 = vrot.slane %v823, 4
        %v861 = vsel %vm664, %v860, %v811
        %v862 = vrot.slane %v811, 4
        %v863 = vsel %vm664, %v823, %v862
        %v865 = vunpack.c.l.s4 1934713408
        %v866 = vunpack.c.0.s8 %v865
        %v867 = vperm.slane %v861, %v866
        %v869 = vunpack.c.l.s4 1934713408
        %v870 = vunpack.c.0.s8 %v869
        %v871 = vperm.slane %v863, %v870
        %v872 = vrot.slane %v855, 4
        %v873 = vsel %vm664, %v872, %v831
        %v874 = vrot.slane %v831, 4
        %v875 = vsel %vm664, %v855, %v874
        %v876 = vrot.slane %v859, 4
        %v877 = vsel %vm664, %v876, %v835
        %v878 = vrot.slane %v835, 4
        %v879 = vsel %vm664, %v859, %v878
        %v880 = vrot.slane %v867, 4
        %v881 = vsel %vm664, %v880, %v843
        %v882 = vrot.slane %v843, 4
        %v883 = vsel %vm664, %v867, %v882
        %v884 = vrot.slane %v871, 4
        %v885 = vsel %vm664, %v884, %v847
        %v886 = vrot.slane %v847, 4
        %v887 = vsel %vm664, %v871, %v886
        %v888 = vrot.slane %v383, 4
        %v889 = vsel %vm664, %v888, %v357
        %v890 = vrot.slane %v357, 4
        %v891 = vsel %vm664, %v383, %v890
        %v893 = vunpack.c.l.s4 1983009808
        %v894 = vunpack.c.0.s8 %v893
        %v895 = vperm.slane %v889, %v894
        %v897 = vunpack.c.l.s4 1983009808
        %v898 = vunpack.c.0.s8 %v897
        %v899 = vperm.slane %v891, %v898
        %v900 = vrot.slane %v396, 4
        %v901 = vsel %vm664, %v900, %v370
        %v902 = vrot.slane %v370, 4
        %v903 = vsel %vm664, %v396, %v902
        %v905 = vunpack.c.l.s4 1983009808
        %v906 = vunpack.c.0.s8 %v905
        %v907 = vperm.slane %v901, %v906
        %v909 = vunpack.c.l.s4 1983009808
        %v910 = vunpack.c.0.s8 %v909
        %v911 = vperm.slane %v903, %v910
        %v912 = vrot.slane %v435, 4
        %v913 = vsel %vm664, %v912, %v409
        %v914 = vrot.slane %v409, 4
        %v915 = vsel %vm664, %v435, %v914
        %v917 = vunpack.c.l.s4 1983009808
        %v918 = vunpack.c.0.s8 %v917
        %v919 = vperm.slane %v913, %v918
        %v921 = vunpack.c.l.s4 1983009808
        %v922 = vunpack.c.0.s8 %v921
        %v923 = vperm.slane %v915, %v922
        %v924 = vrot.slane %v448, 4
        %v925 = vsel %vm664, %v924, %v422
        %v926 = vrot.slane %v422, 4
        %v927 = vsel %vm664, %v448, %v926
        %v929 = vunpack.c.l.s4 1983009808
        %v930 = vunpack.c.0.s8 %v929
        %v931 = vperm.slane %v925, %v930
        %v933 = vunpack.c.l.s4 1983009808
        %v934 = vunpack.c.0.s8 %v933
        %v935 = vperm.slane %v927, %v934
        %v936 = vrot.slane %v907, 4
        %v937 = vsel %vm664, %v936, %v895
        %v938 = vrot.slane %v895, 4
        %v939 = vsel %vm664, %v907, %v938
        %v941 = vunpack.c.l.s4 1934713408
        %v942 = vunpack.c.0.s8 %v941
        %v943 = vperm.slane %v937, %v942
        %v945 = vunpack.c.l.s4 1934713408
        %v946 = vunpack.c.0.s8 %v945
        %v947 = vperm.slane %v939, %v946
        %v948 = vrot.slane %v911, 4
        %v949 = vsel %vm664, %v948, %v899
        %v950 = vrot.slane %v899, 4
        %v951 = vsel %vm664, %v911, %v950
        %v953 = vunpack.c.l.s4 1934713408
        %v954 = vunpack.c.0.s8 %v953
        %v955 = vperm.slane %v949, %v954
        %v957 = vunpack.c.l.s4 1934713408
        %v958 = vunpack.c.0.s8 %v957
        %v959 = vperm.slane %v951, %v958
        %v960 = vrot.slane %v931, 4
        %v961 = vsel %vm664, %v960, %v919
        %v962 = vrot.slane %v919, 4
        %v963 = vsel %vm664, %v931, %v962
        %v965 = vunpack.c.l.s4 1934713408
        %v966 = vunpack.c.0.s8 %v965
        %v967 = vperm.slane %v961, %v966
        %v969 = vunpack.c.l.s4 1934713408
        %v970 = vunpack.c.0.s8 %v969
        %v971 = vperm.slane %v963, %v970
        %v972 = vrot.slane %v935, 4
        %v973 = vsel %vm664, %v972, %v923
        %v974 = vrot.slane %v923, 4
        %v975 = vsel %vm664, %v935, %v974
        %v977 = vunpack.c.l.s4 1934713408
        %v978 = vunpack.c.0.s8 %v977
        %v979 = vperm.slane %v973, %v978
        %v981 = vunpack.c.l.s4 1934713408
        %v982 = vunpack.c.0.s8 %v981
        %v983 = vperm.slane %v975, %v982
        %v984 = vrot.slane %v967, 4
        %v985 = vsel %vm664, %v984, %v943
        %v986 = vrot.slane %v943, 4
        %v987 = vsel %vm664, %v967, %v986
        %v988 = vrot.slane %v971, 4
        %v989 = vsel %vm664, %v988, %v947
        %v990 = vrot.slane %v947, 4
        %v991 = vsel %vm664, %v971, %v990
        %v992 = vrot.slane %v979, 4
        %v993 = vsel %vm664, %v992, %v955
        %v994 = vrot.slane %v955, 4
        %v995 = vsel %vm664, %v979, %v994
        %v996 = vrot.slane %v983, 4
        %v997 = vsel %vm664, %v996, %v959
        %v998 = vrot.slane %v959, 4
        %v999 = vsel %vm664, %v983, %v998
        %v1000 = vrot.slane %v487, 4
        %v1001 = vsel %vm664, %v1000, %v461
        %v1002 = vrot.slane %v461, 4
        %v1003 = vsel %vm664, %v487, %v1002
        %v1005 = vunpack.c.l.s4 1983009808
        %v1006 = vunpack.c.0.s8 %v1005
        %v1007 = vperm.slane %v1001, %v1006
        %v1009 = vunpack.c.l.s4 1983009808
        %v1010 = vunpack.c.0.s8 %v1009
        %v1011 = vperm.slane %v1003, %v1010
        %v1012 = vrot.slane %v500, 4
        %v1013 = vsel %vm664, %v1012, %v474
        %v1014 = vrot.slane %v474, 4
        %v1015 = vsel %vm664, %v500, %v1014
        %v1017 = vunpack.c.l.s4 1983009808
        %v1018 = vunpack.c.0.s8 %v1017
        %v1019 = vperm.slane %v1013, %v1018
        %v1021 = vunpack.c.l.s4 1983009808
        %v1022 = vunpack.c.0.s8 %v1021
        %v1023 = vperm.slane %v1015, %v1022
        %v1024 = vrot.slane %v539, 4
        %v1025 = vsel %vm664, %v1024, %v513
        %v1026 = vrot.slane %v513, 4
        %v1027 = vsel %vm664, %v539, %v1026
        %v1029 = vunpack.c.l.s4 1983009808
        %v1030 = vunpack.c.0.s8 %v1029
        %v1031 = vperm.slane %v1025, %v1030
        %v1033 = vunpack.c.l.s4 1983009808
        %v1034 = vunpack.c.0.s8 %v1033
        %v1035 = vperm.slane %v1027, %v1034
        %v1036 = vrot.slane %v552, 4
        %v1037 = vsel %vm664, %v1036, %v526
        %v1038 = vrot.slane %v526, 4
        %v1039 = vsel %vm664, %v552, %v1038
        %v1041 = vunpack.c.l.s4 1983009808
        %v1042 = vunpack.c.0.s8 %v1041
        %v1043 = vperm.slane %v1037, %v1042
        %v1045 = vunpack.c.l.s4 1983009808
        %v1046 = vunpack.c.0.s8 %v1045
        %v1047 = vperm.slane %v1039, %v1046
        %v1048 = vrot.slane %v1019, 4
        %v1049 = vsel %vm664, %v1048, %v1007
        %v1050 = vrot.slane %v1007, 4
        %v1051 = vsel %vm664, %v1019, %v1050
        %v1053 = vunpack.c.l.s4 1934713408
        %v1054 = vunpack.c.0.s8 %v1053
        %v1055 = vperm.slane %v1049, %v1054
        %v1057 = vunpack.c.l.s4 1934713408
        %v1058 = vunpack.c.0.s8 %v1057
        %v1059 = vperm.slane %v1051, %v1058
        %v1060 = vrot.slane %v1023, 4
        %v1061 = vsel %vm664, %v1060, %v1011
        %v1062 = vrot.slane %v1011, 4
        %v1063 = vsel %vm664, %v1023, %v1062
        %v1065 = vunpack.c.l.s4 1934713408
        %v1066 = vunpack.c.0.s8 %v1065
        %v1067 = vperm.slane %v1061, %v1066
        %v1069 = vunpack.c.l.s4 1934713408
        %v1070 = vunpack.c.0.s8 %v1069
        %v1071 = vperm.slane %v1063, %v1070
        %v1072 = vrot.slane %v1043, 4
        %v1073 = vsel %vm664, %v1072, %v1031
        %v1074 = vrot.slane %v1031, 4
        %v1075 = vsel %vm664, %v1043, %v1074
        %v1077 = vunpack.c.l.s4 1934713408
        %v1078 = vunpack.c.0.s8 %v1077
        %v1079 = vperm.slane %v1073, %v1078
        %v1081 = vunpack.c.l.s4 1934713408
        %v1082 = vunpack.c.0.s8 %v1081
        %v1083 = vperm.slane %v1075, %v1082
        %v1084 = vrot.slane %v1047, 4
        %v1085 = vsel %vm664, %v1084, %v1035
        %v1086 = vrot.slane %v1035, 4
        %v1087 = vsel %vm664, %v1047, %v1086
        %v1089 = vunpack.c.l.s4 1934713408
        %v1090 = vunpack.c.0.s8 %v1089
        %v1091 = vperm.slane %v1085, %v1090
        %v1093 = vunpack.c.l.s4 1934713408
        %v1094 = vunpack.c.0.s8 %v1093
        %v1095 = vperm.slane %v1087, %v1094
        %v1096 = vrot.slane %v1079, 4
        %v1097 = vsel %vm664, %v1096, %v1055
        %v1098 = vrot.slane %v1055, 4
        %v1099 = vsel %vm664, %v1079, %v1098
        %v1100 = vrot.slane %v1083, 4
        %v1101 = vsel %vm664, %v1100, %v1059
        %v1102 = vrot.slane %v1059, 4
        %v1103 = vsel %vm664, %v1083, %v1102
        %v1104 = vrot.slane %v1091, 4
        %v1105 = vsel %vm664, %v1104, %v1067
        %v1106 = vrot.slane %v1067, 4
        %v1107 = vsel %vm664, %v1091, %v1106
        %v1108 = vrot.slane %v1095, 4
        %v1109 = vsel %vm664, %v1108, %v1071
        %v1110 = vrot.slane %v1071, 4
        %v1111 = vsel %vm664, %v1095, %v1110
        %v1112 = vrot.slane %v591, 4
        %v1113 = vsel %vm664, %v1112, %v565
        %v1114 = vrot.slane %v565, 4
        %v1115 = vsel %vm664, %v591, %v1114
        %v1117 = vunpack.c.l.s4 1983009808
        %v1118 = vunpack.c.0.s8 %v1117
        %v1119 = vperm.slane %v1113, %v1118
        %v1121 = vunpack.c.l.s4 1983009808
        %v1122 = vunpack.c.0.s8 %v1121
        %v1123 = vperm.slane %v1115, %v1122
        %v1124 = vrot.slane %v604, 4
        %v1125 = vsel %vm664, %v1124, %v578
        %v1126 = vrot.slane %v578, 4
        %v1127 = vsel %vm664, %v604, %v1126
        %v1129 = vunpack.c.l.s4 1983009808
        %v1130 = vunpack.c.0.s8 %v1129
        %v1131 = vperm.slane %v1125, %v1130
        %v1133 = vunpack.c.l.s4 1983009808
        %v1134 = vunpack.c.0.s8 %v1133
        %v1135 = vperm.slane %v1127, %v1134
        %v1136 = vrot.slane %v643, 4
        %v1137 = vsel %vm664, %v1136, %v617
        %v1138 = vrot.slane %v617, 4
        %v1139 = vsel %vm664, %v643, %v1138
        %v1141 = vunpack.c.l.s4 1983009808
        %v1142 = vunpack.c.0.s8 %v1141
        %v1143 = vperm.slane %v1137, %v1142
        %v1145 = vunpack.c.l.s4 1983009808
        %v1146 = vunpack.c.0.s8 %v1145
        %v1147 = vperm.slane %v1139, %v1146
        %v1148 = vrot.slane %v656, 4
        %v1149 = vsel %vm664, %v1148, %v630
        %v1150 = vrot.slane %v630, 4
        %v1151 = vsel %vm664, %v656, %v1150
        %v1153 = vunpack.c.l.s4 1983009808
        %v1154 = vunpack.c.0.s8 %v1153
        %v1155 = vperm.slane %v1149, %v1154
        %v1157 = vunpack.c.l.s4 1983009808
        %v1158 = vunpack.c.0.s8 %v1157
        %v1159 = vperm.slane %v1151, %v1158
        %v1160 = vrot.slane %v1131, 4
        %v1161 = vsel %vm664, %v1160, %v1119
        %v1162 = vrot.slane %v1119, 4
        %v1163 = vsel %vm664, %v1131, %v1162
        %v1165 = vunpack.c.l.s4 1934713408
        %v1166 = vunpack.c.0.s8 %v1165
        %v1167 = vperm.slane %v1161, %v1166
        %v1169 = vunpack.c.l.s4 1934713408
        %v1170 = vunpack.c.0.s8 %v1169
        %v1171 = vperm.slane %v1163, %v1170
        %v1172 = vrot.slane %v1135, 4
        %v1173 = vsel %vm664, %v1172, %v1123
        %v1174 = vrot.slane %v1123, 4
        %v1175 = vsel %vm664, %v1135, %v1174
        %v1177 = vunpack.c.l.s4 1934713408
        %v1178 = vunpack.c.0.s8 %v1177
        %v1179 = vperm.slane %v1173, %v1178
        %v1181 = vunpack.c.l.s4 1934713408
        %v1182 = vunpack.c.0.s8 %v1181
        %v1183 = vperm.slane %v1175, %v1182
        %v1184 = vrot.slane %v1155, 4
        %v1185 = vsel %vm664, %v1184, %v1143
        %v1186 = vrot.slane %v1143, 4
        %v1187 = vsel %vm664, %v1155, %v1186
        %v1189 = vunpack.c.l.s4 1934713408
        %v1190 = vunpack.c.0.s8 %v1189
        %v1191 = vperm.slane %v1185, %v1190
        %v1193 = vunpack.c.l.s4 1934713408
        %v1194 = vunpack.c.0.s8 %v1193
        %v1195 = vperm.slane %v1187, %v1194
        %v1196 = vrot.slane %v1159, 4
        %v1197 = vsel %vm664, %v1196, %v1147
        %v1198 = vrot.slane %v1147, 4
        %v1199 = vsel %vm664, %v1159, %v1198
        %v1201 = vunpack.c.l.s4 1934713408
        %v1202 = vunpack.c.0.s8 %v1201
        %v1203 = vperm.slane %v1197, %v1202
        %v1205 = vunpack.c.l.s4 1934713408
        %v1206 = vunpack.c.0.s8 %v1205
        %v1207 = vperm.slane %v1199, %v1206
        %v1208 = vrot.slane %v1191, 4
        %v1209 = vsel %vm664, %v1208, %v1167
        %v1210 = vrot.slane %v1167, 4
        %v1211 = vsel %vm664, %v1191, %v1210
        %v1212 = vrot.slane %v1195, 4
        %v1213 = vsel %vm664, %v1212, %v1171
        %v1214 = vrot.slane %v1171, 4
        %v1215 = vsel %vm664, %v1195, %v1214
        %v1216 = vrot.slane %v1203, 4
        %v1217 = vsel %vm664, %v1216, %v1179
        %v1218 = vrot.slane %v1179, 4
        %v1219 = vsel %vm664, %v1203, %v1218
        %v1220 = vrot.slane %v1207, 4
        %v1221 = vsel %vm664, %v1220, %v1183
        %v1222 = vrot.slane %v1183, 4
        %v1223 = vsel %vm664, %v1207, %v1222
        %v1224 = vrot.slane %v181, 4
        %v1225 = vsel %vm664, %v1224, %v155
        %v1226 = vrot.slane %v155, 4
        %v1227 = vsel %vm664, %v181, %v1226
        %v1229 = vunpack.c.l.s4 1983009808
        %v1230 = vunpack.c.0.s8 %v1229
        %v1231 = vperm.slane %v1225, %v1230
        %v1233 = vunpack.c.l.s4 1983009808
        %v1234 = vunpack.c.0.s8 %v1233
        %v1235 = vperm.slane %v1227, %v1234
        %v1236 = vrot.slane %v194, 4
        %v1237 = vsel %vm664, %v1236, %v168
        %v1238 = vrot.slane %v168, 4
        %v1239 = vsel %vm664, %v194, %v1238
        %v1241 = vunpack.c.l.s4 1983009808
        %v1242 = vunpack.c.0.s8 %v1241
        %v1243 = vperm.slane %v1237, %v1242
        %v1245 = vunpack.c.l.s4 1983009808
        %v1246 = vunpack.c.0.s8 %v1245
        %v1247 = vperm.slane %v1239, %v1246
        %v1248 = vrot.slane %v233, 4
        %v1249 = vsel %vm664, %v1248, %v207
        %v1250 = vrot.slane %v207, 4
        %v1251 = vsel %vm664, %v233, %v1250
        %v1253 = vunpack.c.l.s4 1983009808
        %v1254 = vunpack.c.0.s8 %v1253
        %v1255 = vperm.slane %v1249, %v1254
        %v1257 = vunpack.c.l.s4 1983009808
        %v1258 = vunpack.c.0.s8 %v1257
        %v1259 = vperm.slane %v1251, %v1258
        %v1260 = vrot.slane %v246, 4
        %v1261 = vsel %vm664, %v1260, %v220
        %v1262 = vrot.slane %v220, 4
        %v1263 = vsel %vm664, %v246, %v1262
        %v1265 = vunpack.c.l.s4 1983009808
        %v1266 = vunpack.c.0.s8 %v1265
        %v1267 = vperm.slane %v1261, %v1266
        %v1269 = vunpack.c.l.s4 1983009808
        %v1270 = vunpack.c.0.s8 %v1269
        %v1271 = vperm.slane %v1263, %v1270
        %v1272 = vrot.slane %v1243, 4
        %v1273 = vsel %vm664, %v1272, %v1231
        %v1274 = vrot.slane %v1231, 4
        %v1275 = vsel %vm664, %v1243, %v1274
        %v1277 = vunpack.c.l.s4 1934713408
        %v1278 = vunpack.c.0.s8 %v1277
        %v1279 = vperm.slane %v1273, %v1278
        %v1281 = vunpack.c.l.s4 1934713408
        %v1282 = vunpack.c.0.s8 %v1281
        %v1283 = vperm.slane %v1275, %v1282
        %v1284 = vrot.slane %v1247, 4
        %v1285 = vsel %vm664, %v1284, %v1235
        %v1286 = vrot.slane %v1235, 4
        %v1287 = vsel %vm664, %v1247, %v1286
        %v1289 = vunpack.c.l.s4 1934713408
        %v1290 = vunpack.c.0.s8 %v1289
        %v1291 = vperm.slane %v1285, %v1290
        %v1293 = vunpack.c.l.s4 1934713408
        %v1294 = vunpack.c.0.s8 %v1293
        %v1295 = vperm.slane %v1287, %v1294
        %v1296 = vrot.slane %v1267, 4
        %v1297 = vsel %vm664, %v1296, %v1255
        %v1298 = vrot.slane %v1255, 4
        %v1299 = vsel %vm664, %v1267, %v1298
        %v1301 = vunpack.c.l.s4 1934713408
        %v1302 = vunpack.c.0.s8 %v1301
        %v1303 = vperm.slane %v1297, %v1302
        %v1305 = vunpack.c.l.s4 1934713408
        %v1306 = vunpack.c.0.s8 %v1305
        %v1307 = vperm.slane %v1299, %v1306
        %v1308 = vrot.slane %v1271, 4
        %v1309 = vsel %vm664, %v1308, %v1259
        %v1310 = vrot.slane %v1259, 4
        %v1311 = vsel %vm664, %v1271, %v1310
        %v1313 = vunpack.c.l.s4 1934713408
        %v1314 = vunpack.c.0.s8 %v1313
        %v1315 = vperm.slane %v1309, %v1314
        %v1317 = vunpack.c.l.s4 1934713408
        %v1318 = vunpack.c.0.s8 %v1317
        %v1319 = vperm.slane %v1311, %v1318
        %v1320 = vrot.slane %v1303, 4
        %v1321 = vsel %vm664, %v1320, %v1279
        %v1322 = vrot.slane %v1279, 4
        %v1323 = vsel %vm664, %v1303, %v1322
        %v1324 = vrot.slane %v1307, 4
        %v1325 = vsel %vm664, %v1324, %v1283
        %v1326 = vrot.slane %v1283, 4
        %v1327 = vsel %vm664, %v1307, %v1326
        %v1328 = vrot.slane %v1315, 4
        %v1329 = vsel %vm664, %v1328, %v1291
        %v1330 = vrot.slane %v1291, 4
        %v1331 = vsel %vm664, %v1315, %v1330
        %v1332 = vrot.slane %v1319, 4
        %v1333 = vsel %vm664, %v1332, %v1295
        %v1334 = vrot.slane %v1295, 4
        %v1335 = vsel %vm664, %v1319, %v1334
        %v1336 = vrot.slane %v285, 4
        %v1337 = vsel %vm664, %v1336, %v259
        %v1338 = vrot.slane %v259, 4
        %v1339 = vsel %vm664, %v285, %v1338
        %v1341 = vunpack.c.l.s4 1983009808
        %v1342 = vunpack.c.0.s8 %v1341
        %v1343 = vperm.slane %v1337, %v1342
        %v1345 = vunpack.c.l.s4 1983009808
        %v1346 = vunpack.c.0.s8 %v1345
        %v1347 = vperm.slane %v1339, %v1346
        %v1348 = vrot.slane %v298, 4
        %v1349 = vsel %vm664, %v1348, %v272
        %v1350 = vrot.slane %v272, 4
        %v1351 = vsel %vm664, %v298, %v1350
        %v1353 = vunpack.c.l.s4 1983009808
        %v1354 = vunpack.c.0.s8 %v1353
        %v1355 = vperm.slane %v1349, %v1354
        %v1357 = vunpack.c.l.s4 1983009808
        %v1358 = vunpack.c.0.s8 %v1357
        %v1359 = vperm.slane %v1351, %v1358
        %v1360 = vrot.slane %v337, 4
        %v1361 = vsel %vm664, %v1360, %v311
        %v1362 = vrot.slane %v311, 4
        %v1363 = vsel %vm664, %v337, %v1362
        %v1365 = vunpack.c.l.s4 1983009808
        %v1366 = vunpack.c.0.s8 %v1365
        %v1367 = vperm.slane %v1361, %v1366
        %v1369 = vunpack.c.l.s4 1983009808
        %v1370 = vunpack.c.0.s8 %v1369
        %v1371 = vperm.slane %v1363, %v1370
        %v1372 = vrot.slane %v350, 4
        %v1373 = vsel %vm664, %v1372, %v324
        %v1374 = vrot.slane %v324, 4
        %v1375 = vsel %vm664, %v350, %v1374
        %v1377 = vunpack.c.l.s4 1983009808
        %v1378 = vunpack.c.0.s8 %v1377
        %v1379 = vperm.slane %v1373, %v1378
        %v1381 = vunpack.c.l.s4 1983009808
        %v1382 = vunpack.c.0.s8 %v1381
        %v1383 = vperm.slane %v1375, %v1382
        %v1384 = vrot.slane %v1355, 4
        %v1385 = vsel %vm664, %v1384, %v1343
        %v1386 = vrot.slane %v1343, 4
        %v1387 = vsel %vm664, %v1355, %v1386
        %v1389 = vunpack.c.l.s4 1934713408
        %v1390 = vunpack.c.0.s8 %v1389
        %v1391 = vperm.slane %v1385, %v1390
        %v1393 = vunpack.c.l.s4 1934713408
        %v1394 = vunpack.c.0.s8 %v1393
        %v1395 = vperm.slane %v1387, %v1394
        %v1396 = vrot.slane %v1359, 4
        %v1397 = vsel %vm664, %v1396, %v1347
        %v1398 = vrot.slane %v1347, 4
        %v1399 = vsel %vm664, %v1359, %v1398
        %v1401 = vunpack.c.l.s4 1934713408
        %v1402 = vunpack.c.0.s8 %v1401
        %v1403 = vperm.slane %v1397, %v1402
        %v1405 = vunpack.c.l.s4 1934713408
        %v1406 = vunpack.c.0.s8 %v1405
        %v1407 = vperm.slane %v1399, %v1406
        %v1408 = vrot.slane %v1379, 4
        %v1409 = vsel %vm664, %v1408, %v1367
        %v1410 = vrot.slane %v1367, 4
        %v1411 = vsel %vm664, %v1379, %v1410
        %v1413 = vunpack.c.l.s4 1934713408
        %v1414 = vunpack.c.0.s8 %v1413
        %v1415 = vperm.slane %v1409, %v1414
        %v1417 = vunpack.c.l.s4 1934713408
        %v1418 = vunpack.c.0.s8 %v1417
        %v1419 = vperm.slane %v1411, %v1418
        %v1420 = vrot.slane %v1383, 4
        %v1421 = vsel %vm664, %v1420, %v1371
        %v1422 = vrot.slane %v1371, 4
        %v1423 = vsel %vm664, %v1383, %v1422
        %v1425 = vunpack.c.l.s4 1934713408
        %v1426 = vunpack.c.0.s8 %v1425
        %v1427 = vperm.slane %v1421, %v1426
        %v1429 = vunpack.c.l.s4 1934713408
        %v1430 = vunpack.c.0.s8 %v1429
        %v1431 = vperm.slane %v1423, %v1430
        %v1432 = vrot.slane %v1415, 4
        %v1433 = vsel %vm664, %v1432, %v1391
        %v1434 = vrot.slane %v1391, 4
        %v1435 = vsel %vm664, %v1415, %v1434
        %v1436 = vrot.slane %v1419, 4
        %v1437 = vsel %vm664, %v1436, %v1395
        %v1438 = vrot.slane %v1395, 4
        %v1439 = vsel %vm664, %v1419, %v1438
        %v1440 = vrot.slane %v1427, 4
        %v1441 = vsel %vm664, %v1440, %v1403
        %v1442 = vrot.slane %v1403, 4
        %v1443 = vsel %vm664, %v1427, %v1442
        %v1444 = vrot.slane %v1431, 4
        %v1445 = vsel %vm664, %v1444, %v1407
        %v1446 = vrot.slane %v1407, 4
        %v1447 = vsel %vm664, %v1431, %v1446
        %v1448 = vrot.slane %v389, 4
        %v1449 = vsel %vm664, %v1448, %v363
        %v1450 = vrot.slane %v363, 4
        %v1451 = vsel %vm664, %v389, %v1450
        %v1453 = vunpack.c.l.s4 1983009808
        %v1454 = vunpack.c.0.s8 %v1453
        %v1455 = vperm.slane %v1449, %v1454
        %v1457 = vunpack.c.l.s4 1983009808
        %v1458 = vunpack.c.0.s8 %v1457
        %v1459 = vperm.slane %v1451, %v1458
        %v1460 = vrot.slane %v402, 4
        %v1461 = vsel %vm664, %v1460, %v376
        %v1462 = vrot.slane %v376, 4
        %v1463 = vsel %vm664, %v402, %v1462
        %v1465 = vunpack.c.l.s4 1983009808
        %v1466 = vunpack.c.0.s8 %v1465
        %v1467 = vperm.slane %v1461, %v1466
        %v1469 = vunpack.c.l.s4 1983009808
        %v1470 = vunpack.c.0.s8 %v1469
        %v1471 = vperm.slane %v1463, %v1470
        %v1472 = vrot.slane %v441, 4
        %v1473 = vsel %vm664, %v1472, %v415
        %v1474 = vrot.slane %v415, 4
        %v1475 = vsel %vm664, %v441, %v1474
        %v1477 = vunpack.c.l.s4 1983009808
        %v1478 = vunpack.c.0.s8 %v1477
        %v1479 = vperm.slane %v1473, %v1478
        %v1481 = vunpack.c.l.s4 1983009808
        %v1482 = vunpack.c.0.s8 %v1481
        %v1483 = vperm.slane %v1475, %v1482
        %v1484 = vrot.slane %v454, 4
        %v1485 = vsel %vm664, %v1484, %v428
        %v1486 = vrot.slane %v428, 4
        %v1487 = vsel %vm664, %v454, %v1486
        %v1489 = vunpack.c.l.s4 1983009808
        %v1490 = vunpack.c.0.s8 %v1489
        %v1491 = vperm.slane %v1485, %v1490
        %v1493 = vunpack.c.l.s4 1983009808
        %v1494 = vunpack.c.0.s8 %v1493
        %v1495 = vperm.slane %v1487, %v1494
        %v1496 = vrot.slane %v1467, 4
        %v1497 = vsel %vm664, %v1496, %v1455
        %v1498 = vrot.slane %v1455, 4
        %v1499 = vsel %vm664, %v1467, %v1498
        %v1501 = vunpack.c.l.s4 1934713408
        %v1502 = vunpack.c.0.s8 %v1501
        %v1503 = vperm.slane %v1497, %v1502
        %v1505 = vunpack.c.l.s4 1934713408
        %v1506 = vunpack.c.0.s8 %v1505
        %v1507 = vperm.slane %v1499, %v1506
        %v1508 = vrot.slane %v1471, 4
        %v1509 = vsel %vm664, %v1508, %v1459
        %v1510 = vrot.slane %v1459, 4
        %v1511 = vsel %vm664, %v1471, %v1510
        %v1513 = vunpack.c.l.s4 1934713408
        %v1514 = vunpack.c.0.s8 %v1513
        %v1515 = vperm.slane %v1509, %v1514
        %v1517 = vunpack.c.l.s4 1934713408
        %v1518 = vunpack.c.0.s8 %v1517
        %v1519 = vperm.slane %v1511, %v1518
        %v1520 = vrot.slane %v1491, 4
        %v1521 = vsel %vm664, %v1520, %v1479
        %v1522 = vrot.slane %v1479, 4
        %v1523 = vsel %vm664, %v1491, %v1522
        %v1525 = vunpack.c.l.s4 1934713408
        %v1526 = vunpack.c.0.s8 %v1525
        %v1527 = vperm.slane %v1521, %v1526
        %v1529 = vunpack.c.l.s4 1934713408
        %v1530 = vunpack.c.0.s8 %v1529
        %v1531 = vperm.slane %v1523, %v1530
        %v1532 = vrot.slane %v1495, 4
        %v1533 = vsel %vm664, %v1532, %v1483
        %v1534 = vrot.slane %v1483, 4
        %v1535 = vsel %vm664, %v1495, %v1534
        %v1537 = vunpack.c.l.s4 1934713408
        %v1538 = vunpack.c.0.s8 %v1537
        %v1539 = vperm.slane %v1533, %v1538
        %v1541 = vunpack.c.l.s4 1934713408
        %v1542 = vunpack.c.0.s8 %v1541
        %v1543 = vperm.slane %v1535, %v1542
        %v1544 = vrot.slane %v1527, 4
        %v1545 = vsel %vm664, %v1544, %v1503
        %v1546 = vrot.slane %v1503, 4
        %v1547 = vsel %vm664, %v1527, %v1546
        %v1548 = vrot.slane %v1531, 4
        %v1549 = vsel %vm664, %v1548, %v1507
        %v1550 = vrot.slane %v1507, 4
        %v1551 = vsel %vm664, %v1531, %v1550
        %v1552 = vrot.slane %v1539, 4
        %v1553 = vsel %vm664, %v1552, %v1515
        %v1554 = vrot.slane %v1515, 4
        %v1555 = vsel %vm664, %v1539, %v1554
        %v1556 = vrot.slane %v1543, 4
        %v1557 = vsel %vm664, %v1556, %v1519
        %v1558 = vrot.slane %v1519, 4
        %v1559 = vsel %vm664, %v1543, %v1558
        %v1560 = vrot.slane %v493, 4
        %v1561 = vsel %vm664, %v1560, %v467
        %v1562 = vrot.slane %v467, 4
        %v1563 = vsel %vm664, %v493, %v1562
        %v1565 = vunpack.c.l.s4 1983009808
        %v1566 = vunpack.c.0.s8 %v1565
        %v1567 = vperm.slane %v1561, %v1566
        %v1569 = vunpack.c.l.s4 1983009808
        %v1570 = vunpack.c.0.s8 %v1569
        %v1571 = vperm.slane %v1563, %v1570
        %v1572 = vrot.slane %v506, 4
        %v1573 = vsel %vm664, %v1572, %v480
        %v1574 = vrot.slane %v480, 4
        %v1575 = vsel %vm664, %v506, %v1574
        %v1577 = vunpack.c.l.s4 1983009808
        %v1578 = vunpack.c.0.s8 %v1577
        %v1579 = vperm.slane %v1573, %v1578
        %v1581 = vunpack.c.l.s4 1983009808
        %v1582 = vunpack.c.0.s8 %v1581
        %v1583 = vperm.slane %v1575, %v1582
        %v1584 = vrot.slane %v545, 4
        %v1585 = vsel %vm664, %v1584, %v519
        %v1586 = vrot.slane %v519, 4
        %v1587 = vsel %vm664, %v545, %v1586
        %v1589 = vunpack.c.l.s4 1983009808
        %v1590 = vunpack.c.0.s8 %v1589
        %v1591 = vperm.slane %v1585, %v1590
        %v1593 = vunpack.c.l.s4 1983009808
        %v1594 = vunpack.c.0.s8 %v1593
        %v1595 = vperm.slane %v1587, %v1594
        %v1596 = vrot.slane %v558, 4
        %v1597 = vsel %vm664, %v1596, %v532
        %v1598 = vrot.slane %v532, 4
        %v1599 = vsel %vm664, %v558, %v1598
        %v1601 = vunpack.c.l.s4 1983009808
        %v1602 = vunpack.c.0.s8 %v1601
        %v1603 = vperm.slane %v1597, %v1602
        %v1605 = vunpack.c.l.s4 1983009808
        %v1606 = vunpack.c.0.s8 %v1605
        %v1607 = vperm.slane %v1599, %v1606
        %v1608 = vrot.slane %v1579, 4
        %v1609 = vsel %vm664, %v1608, %v1567
        %v1610 = vrot.slane %v1567, 4
        %v1611 = vsel %vm664, %v1579, %v1610
        %v1613 = vunpack.c.l.s4 1934713408
        %v1614 = vunpack.c.0.s8 %v1613
        %v1615 = vperm.slane %v1609, %v1614
        %v1617 = vunpack.c.l.s4 1934713408
        %v1618 = vunpack.c.0.s8 %v1617
        %v1619 = vperm.slane %v1611, %v1618
        %v1620 = vrot.slane %v1583, 4
        %v1621 = vsel %vm664, %v1620, %v1571
        %v1622 = vrot.slane %v1571, 4
        %v1623 = vsel %vm664, %v1583, %v1622
        %v1625 = vunpack.c.l.s4 1934713408
        %v1626 = vunpack.c.0.s8 %v1625
        %v1627 = vperm.slane %v1621, %v1626
        %v1629 = vunpack.c.l.s4 1934713408
        %v1630 = vunpack.c.0.s8 %v1629
        %v1631 = vperm.slane %v1623, %v1630
        %v1632 = vrot.slane %v1603, 4
        %v1633 = vsel %vm664, %v1632, %v1591
        %v1634 = vrot.slane %v1591, 4
        %v1635 = vsel %vm664, %v1603, %v1634
        %v1637 = vunpack.c.l.s4 1934713408
        %v1638 = vunpack.c.0.s8 %v1637
        %v1639 = vperm.slane %v1633, %v1638
        %v1641 = vunpack.c.l.s4 1934713408
        %v1642 = vunpack.c.0.s8 %v1641
        %v1643 = vperm.slane %v1635, %v1642
        %v1644 = vrot.slane %v1607, 4
        %v1645 = vsel %vm664, %v1644, %v1595
        %v1646 = vrot.slane %v1595, 4
        %v1647 = vsel %vm664, %v1607, %v1646
        %v1649 = vunpack.c.l.s4 1934713408
        %v1650 = vunpack.c.0.s8 %v1649
        %v1651 = vperm.slane %v1645, %v1650
        %v1653 = vunpack.c.l.s4 1934713408
        %v1654 = vunpack.c.0.s8 %v1653
        %v1655 = vperm.slane %v1647, %v1654
        %v1656 = vrot.slane %v1639, 4
        %v1657 = vsel %vm664, %v1656, %v1615
        %v1658 = vrot.slane %v1615, 4
        %v1659 = vsel %vm664, %v1639, %v1658
        %v1660 = vrot.slane %v1643, 4
        %v1661 = vsel %vm664, %v1660, %v1619
        %v1662 = vrot.slane %v1619, 4
        %v1663 = vsel %vm664, %v1643, %v1662
        %v1664 = vrot.slane %v1651, 4
        %v1665 = vsel %vm664, %v1664, %v1627
        %v1666 = vrot.slane %v1627, 4
        %v1667 = vsel %vm664, %v1651, %v1666
        %v1668 = vrot.slane %v1655, 4
        %v1669 = vsel %vm664, %v1668, %v1631
        %v1670 = vrot.slane %v1631, 4
        %v1671 = vsel %vm664, %v1655, %v1670
        %v1672 = vrot.slane %v597, 4
        %v1673 = vsel %vm664, %v1672, %v571
        %v1674 = vrot.slane %v571, 4
        %v1675 = vsel %vm664, %v597, %v1674
        %v1677 = vunpack.c.l.s4 1983009808
        %v1678 = vunpack.c.0.s8 %v1677
        %v1679 = vperm.slane %v1673, %v1678
        %v1681 = vunpack.c.l.s4 1983009808
        %v1682 = vunpack.c.0.s8 %v1681
        %v1683 = vperm.slane %v1675, %v1682
        %v1684 = vrot.slane %v610, 4
        %v1685 = vsel %vm664, %v1684, %v584
        %v1686 = vrot.slane %v584, 4
        %v1687 = vsel %vm664, %v610, %v1686
        %v1689 = vunpack.c.l.s4 1983009808
        %v1690 = vunpack.c.0.s8 %v1689
        %v1691 = vperm.slane %v1685, %v1690
        %v1693 = vunpack.c.l.s4 1983009808
        %v1694 = vunpack.c.0.s8 %v1693
        %v1695 = vperm.slane %v1687, %v1694
        %v1696 = vrot.slane %v649, 4
        %v1697 = vsel %vm664, %v1696, %v623
        %v1698 = vrot.slane %v623, 4
        %v1699 = vsel %vm664, %v649, %v1698
        %v1701 = vunpack.c.l.s4 1983009808
        %v1702 = vunpack.c.0.s8 %v1701
        %v1703 = vperm.slane %v1697, %v1702
        %v1705 = vunpack.c.l.s4 1983009808
        %v1706 = vunpack.c.0.s8 %v1705
        %v1707 = vperm.slane %v1699, %v1706
        %v1708 = vrot.slane %v662, 4
        %v1709 = vsel %vm664, %v1708, %v636
        %v1710 = vrot.slane %v636, 4
        %v1711 = vsel %vm664, %v662, %v1710
        %v1713 = vunpack.c.l.s4 1983009808
        %v1714 = vunpack.c.0.s8 %v1713
        %v1715 = vperm.slane %v1709, %v1714
        %v1717 = vunpack.c.l.s4 1983009808
        %v1718 = vunpack.c.0.s8 %v1717
        %v1719 = vperm.slane %v1711, %v1718
        %v1720 = vrot.slane %v1691, 4
        %v1721 = vsel %vm664, %v1720, %v1679
        %v1722 = vrot.slane %v1679, 4
        %v1723 = vsel %vm664, %v1691, %v1722
        %v1725 = vunpack.c.l.s4 1934713408
        %v1726 = vunpack.c.0.s8 %v1725
        %v1727 = vperm.slane %v1721, %v1726
        %v1729 = vunpack.c.l.s4 1934713408
        %v1730 = vunpack.c.0.s8 %v1729
        %v1731 = vperm.slane %v1723, %v1730
        %v1732 = vrot.slane %v1695, 4
        %v1733 = vsel %vm664, %v1732, %v1683
        %v1734 = vrot.slane %v1683, 4
        %v1735 = vsel %vm664, %v1695, %v1734
        %v1737 = vunpack.c.l.s4 1934713408
        %v1738 = vunpack.c.0.s8 %v1737
        %v1739 = vperm.slane %v1733, %v1738
        %v1741 = vunpack.c.l.s4 1934713408
        %v1742 = vunpack.c.0.s8 %v1741
        %v1743 = vperm.slane %v1735, %v1742
        %v1744 = vrot.slane %v1715, 4
        %v1745 = vsel %vm664, %v1744, %v1703
        %v1746 = vrot.slane %v1703, 4
        %v1747 = vsel %vm664, %v1715, %v1746
        %v1749 = vunpack.c.l.s4 1934713408
        %v1750 = vunpack.c.0.s8 %v1749
        %v1751 = vperm.slane %v1745, %v1750
        %v1753 = vunpack.c.l.s4 1934713408
        %v1754 = vunpack.c.0.s8 %v1753
        %v1755 = vperm.slane %v1747, %v1754
        %v1756 = vrot.slane %v1719, 4
        %v1757 = vsel %vm664, %v1756, %v1707
        %v1758 = vrot.slane %v1707, 4
        %v1759 = vsel %vm664, %v1719, %v1758
        %v1761 = vunpack.c.l.s4 1934713408
        %v1762 = vunpack.c.0.s8 %v1761
        %v1763 = vperm.slane %v1757, %v1762
        %v1765 = vunpack.c.l.s4 1934713408
        %v1766 = vunpack.c.0.s8 %v1765
        %v1767 = vperm.slane %v1759, %v1766
        %v1768 = vrot.slane %v1751, 4
        %v1769 = vsel %vm664, %v1768, %v1727
        %v1770 = vrot.slane %v1727, 4
        %v1771 = vsel %vm664, %v1751, %v1770
        %v1772 = vrot.slane %v1755, 4
        %v1773 = vsel %vm664, %v1772, %v1731
        %v1774 = vrot.slane %v1731, 4
        %v1775 = vsel %vm664, %v1755, %v1774
        %v1776 = vrot.slane %v1763, 4
        %v1777 = vsel %vm664, %v1776, %v1739
        %v1778 = vrot.slane %v1739, 4
        %v1779 = vsel %vm664, %v1763, %v1778
        %v1780 = vrot.slane %v1767, 4
        %v1781 = vsel %vm664, %v1780, %v1743
        %v1782 = vrot.slane %v1743, 4
        %v1783 = vsel %vm664, %v1767, %v1782
        %1789 = vrot.lane.b32.xlu0 %v763, 2
        %v1790 = vpop.permute.xlu0 %1789
        %1791 = vrot.lane.b32.xlu0 %v875, 2
        %v1792 = vpop.permute.xlu0 %1791
        %1793 = vrot.lane.b32.xlu0 %v987, 2
        %v1794 = vpop.permute.xlu0 %1793
        %1795 = vrot.lane.b32.xlu0 %v1099, 2
        %v1796 = vpop.permute.xlu0 %1795
        %1797 = vrot.lane.b32.xlu0 %v1211, 2
        %v1798 = vpop.permute.xlu0 %1797
        %1809 = vrot.lane.b32.xlu0 %v765, 4
        %v1810 = vpop.permute.xlu0 %1809
        %1811 = vrot.lane.b32.xlu0 %v877, 4
        %v1812 = vpop.permute.xlu0 %1811
        %1813 = vrot.lane.b32.xlu0 %v989, 4
        %v1814 = vpop.permute.xlu0 %1813
        %1815 = vrot.lane.b32.xlu0 %v1101, 4
        %v1816 = vpop.permute.xlu0 %1815
        %1817 = vrot.lane.b32.xlu0 %v1213, 4
        %v1818 = vpop.permute.xlu0 %1817
        %1829 = vrot.lane.b32.xlu0 %v767, 6
        %v1830 = vpop.permute.xlu0 %1829
        %1831 = vrot.lane.b32.xlu0 %v879, 6
        %v1832 = vpop.permute.xlu0 %1831
        %1833 = vrot.lane.b32.xlu0 %v991, 6
        %v1834 = vpop.permute.xlu0 %1833
        %1835 = vrot.lane.b32.xlu0 %v1103, 6
        %v1836 = vpop.permute.xlu0 %1835
        %1837 = vrot.lane.b32.xlu0 %v1215, 6
        %v1838 = vpop.permute.xlu0 %1837
        %1849 = vrot.lane.b32.xlu0 %v769, 8
        %v1850 = vpop.permute.xlu0 %1849
        %1851 = vrot.lane.b32.xlu0 %v881, 8
        %v1852 = vpop.permute.xlu0 %1851
        %1853 = vrot.lane.b32.xlu0 %v993, 8
        %v1854 = vpop.permute.xlu0 %1853
        %1855 = vrot.lane.b32.xlu0 %v1105, 8
        %v1856 = vpop.permute.xlu0 %1855
        %1857 = vrot.lane.b32.xlu0 %v1217, 8
        %v1858 = vpop.permute.xlu0 %1857
        %1869 = vrot.lane.b32.xlu0 %v771, 10
        %v1870 = vpop.permute.xlu0 %1869
        %1871 = vrot.lane.b32.xlu0 %v883, 10
        %v1872 = vpop.permute.xlu0 %1871
        %1873 = vrot.lane.b32.xlu0 %v995, 10
        %v1874 = vpop.permute.xlu0 %1873
        %1875 = vrot.lane.b32.xlu0 %v1107, 10
        %v1876 = vpop.permute.xlu0 %1875
        %1877 = vrot.lane.b32.xlu0 %v1219, 10
        %v1878 = vpop.permute.xlu0 %1877
        %1889 = vrot.lane.b32.xlu0 %v773, 12
        %v1890 = vpop.permute.xlu0 %1889
        %1891 = vrot.lane.b32.xlu0 %v885, 12
        %v1892 = vpop.permute.xlu0 %1891
        %1893 = vrot.lane.b32.xlu0 %v997, 12
        %v1894 = vpop.permute.xlu0 %1893
        %1895 = vrot.lane.b32.xlu0 %v1109, 12
        %v1896 = vpop.permute.xlu0 %1895
        %1897 = vrot.lane.b32.xlu0 %v1221, 12
        %v1898 = vpop.permute.xlu0 %1897
        %1909 = vrot.lane.b32.xlu0 %v775, 14
        %v1910 = vpop.permute.xlu0 %1909
        %1911 = vrot.lane.b32.xlu0 %v887, 14
        %v1912 = vpop.permute.xlu0 %1911
        %1913 = vrot.lane.b32.xlu0 %v999, 14
        %v1914 = vpop.permute.xlu0 %1913
        %1915 = vrot.lane.b32.xlu0 %v1111, 14
        %v1916 = vpop.permute.xlu0 %1915
        %1917 = vrot.lane.b32.xlu0 %v1223, 14
        %v1918 = vpop.permute.xlu0 %1917
        %1929 = vrot.lane.b32.xlu0 %v1321, 16
        %v1930 = vpop.permute.xlu0 %1929
        %1931 = vrot.lane.b32.xlu0 %v1433, 16
        %v1932 = vpop.permute.xlu0 %1931
        %1933 = vrot.lane.b32.xlu0 %v1545, 16
        %v1934 = vpop.permute.xlu0 %1933
        %1935 = vrot.lane.b32.xlu0 %v1657, 16
        %v1936 = vpop.permute.xlu0 %1935
        %1937 = vrot.lane.b32.xlu0 %v1769, 16
        %v1938 = vpop.permute.xlu0 %1937
        %1949 = vrot.lane.b32.xlu0 %v1323, 18
        %v1950 = vpop.permute.xlu0 %1949
        %1951 = vrot.lane.b32.xlu0 %v1435, 18
        %v1952 = vpop.permute.xlu0 %1951
        %1953 = vrot.lane.b32.xlu0 %v1547, 18
        %v1954 = vpop.permute.xlu0 %1953
        %1955 = vrot.lane.b32.xlu0 %v1659, 18
        %v1956 = vpop.permute.xlu0 %1955
        %1957 = vrot.lane.b32.xlu0 %v1771, 18
        %v1958 = vpop.permute.xlu0 %1957
        %1969 = vrot.lane.b32.xlu0 %v1325, 20
        %v1970 = vpop.permute.xlu0 %1969
        %1971 = vrot.lane.b32.xlu0 %v1437, 20
        %v1972 = vpop.permute.xlu0 %1971
        %1973 = vrot.lane.b32.xlu0 %v1549, 20
        %v1974 = vpop.permute.xlu0 %1973
        %1975 = vrot.lane.b32.xlu0 %v1661, 20
        %v1976 = vpop.permute.xlu0 %1975
        %1977 = vrot.lane.b32.xlu0 %v1773, 20
        %v1978 = vpop.permute.xlu0 %1977
        %1989 = vrot.lane.b32.xlu0 %v1327, 22
        %v1990 = vpop.permute.xlu0 %1989
        %1991 = vrot.lane.b32.xlu0 %v1439, 22
        %v1992 = vpop.permute.xlu0 %1991
        %1993 = vrot.lane.b32.xlu0 %v1551, 22
        %v1994 = vpop.permute.xlu0 %1993
        %1995 = vrot.lane.b32.xlu0 %v1663, 22
        %v1996 = vpop.permute.xlu0 %1995
        %1997 = vrot.lane.b32.xlu0 %v1775, 22
        %v1998 = vpop.permute.xlu0 %1997
        %2009 = vrot.lane.b32.xlu0 %v1329, 24
        %v2010 = vpop.permute.xlu0 %2009
        %2011 = vrot.lane.b32.xlu0 %v1441, 24
        %v2012 = vpop.permute.xlu0 %2011
        %2013 = vrot.lane.b32.xlu0 %v1553, 24
        %v2014 = vpop.permute.xlu0 %2013
        %2015 = vrot.lane.b32.xlu0 %v1665, 24
        %v2016 = vpop.permute.xlu0 %2015
        %2017 = vrot.lane.b32.xlu0 %v1777, 24
        %v2018 = vpop.permute.xlu0 %2017
        %2029 = vrot.lane.b32.xlu0 %v1331, 26
        %v2030 = vpop.permute.xlu0 %2029
        %2031 = vrot.lane.b32.xlu0 %v1443, 26
        %v2032 = vpop.permute.xlu0 %2031
        %2033 = vrot.lane.b32.xlu0 %v1555, 26
        %v2034 = vpop.permute.xlu0 %2033
        %2035 = vrot.lane.b32.xlu0 %v1667, 26
        %v2036 = vpop.permute.xlu0 %2035
        %2037 = vrot.lane.b32.xlu0 %v1779, 26
        %v2038 = vpop.permute.xlu0 %2037
        %2049 = vrot.lane.b32.xlu0 %v1333, 28
        %v2050 = vpop.permute.xlu0 %2049
        %2051 = vrot.lane.b32.xlu0 %v1445, 28
        %v2052 = vpop.permute.xlu0 %2051
        %2053 = vrot.lane.b32.xlu0 %v1557, 28
        %v2054 = vpop.permute.xlu0 %2053
        %2055 = vrot.lane.b32.xlu0 %v1669, 28
        %v2056 = vpop.permute.xlu0 %2055
        %2057 = vrot.lane.b32.xlu0 %v1781, 28
        %v2058 = vpop.permute.xlu0 %2057
        %2069 = vrot.lane.b32.xlu0 %v1335, 30
        %v2070 = vpop.permute.xlu0 %2069
        %2071 = vrot.lane.b32.xlu0 %v1447, 30
        %v2072 = vpop.permute.xlu0 %2071
        %2073 = vrot.lane.b32.xlu0 %v1559, 30
        %v2074 = vpop.permute.xlu0 %2073
        %2075 = vrot.lane.b32.xlu0 %v1671, 30
        %v2076 = vpop.permute.xlu0 %2075
        %2077 = vrot.lane.b32.xlu0 %v1783, 30
        %v2078 = vpop.permute.xlu0 %2077
        %vm2084 = vcmask 15360
        %v2085 = vsel %vm2084, %v761, %v1790
        %v2086 = vsel %vm2084, %v873, %v1792
        %v2087 = vsel %vm2084, %v985, %v1794
        %v2088 = vsel %vm2084, %v1097, %v1796
        %v2089 = vsel %vm2084, %v1209, %v1798
        %vm2090 = vcmask 31744
        %v2091 = vsel %vm2090, %v2085, %v1810
        %v2092 = vsel %vm2090, %v2086, %v1812
        %v2093 = vsel %vm2090, %v2087, %v1814
        %v2094 = vsel %vm2090, %v2088, %v1816
        %v2095 = vsel %vm2090, %v2089, %v1818
        %vm2096 = vcmask 48128
        %v2097 = vsel %vm2096, %v2091, %v1830
        %v2098 = vsel %vm2096, %v2092, %v1832
        %v2099 = vsel %vm2096, %v2093, %v1834
        %v2100 = vsel %vm2096, %v2094, %v1836
        %v2101 = vsel %vm2096, %v2095, %v1838
        %vm2102 = vcmask 64512
        %v2103 = vsel %vm2102, %v2097, %v1850
        %v2104 = vsel %vm2102, %v2098, %v1852
        %v2105 = vsel %vm2102, %v2099, %v1854
        %v2106 = vsel %vm2102, %v2100, %v1856
        %v2107 = vsel %vm2102, %v2101, %v1858
        %vm2108 = vcmask 80896
        %v2109 = vsel %vm2108, %v2103, %v1870
        %v2110 = vsel %vm2108, %v2104, %v1872
        %v2111 = vsel %vm2108, %v2105, %v1874
        %v2112 = vsel %vm2108, %v2106, %v1876
        %v2113 = vsel %vm2108, %v2107, %v1878
        %vm2114 = vcmask 97280
        %v2115 = vsel %vm2114, %v2109, %v1890
        %v2116 = vsel %vm2114, %v2110, %v1892
        %v2117 = vsel %vm2114, %v2111, %v1894
        %v2118 = vsel %vm2114, %v2112, %v1896
        %v2119 = vsel %vm2114, %v2113, %v1898
        %vm2120 = vcmask 113664
        %v2121 = vsel %vm2120, %v2115, %v1910
        %v2122 = vsel %vm2120, %v2116, %v1912
        %v2123 = vsel %vm2120, %v2117, %v1914
        %v2124 = vsel %vm2120, %v2118, %v1916
        %v2125 = vsel %vm2120, %v2119, %v1918
        %vm2126 = vcmask 130048
        %v2127 = vsel %vm2126, %v2121, %v1930
        %v2128 = vsel %vm2126, %v2122, %v1932
        %v2129 = vsel %vm2126, %v2123, %v1934
        %v2130 = vsel %vm2126, %v2124, %v1936
        %v2131 = vsel %vm2126, %v2125, %v1938
        %vm2132 = vcmask 146432
        %v2133 = vsel %vm2132, %v2127, %v1950
        %v2134 = vsel %vm2132, %v2128, %v1952
        %v2135 = vsel %vm2132, %v2129, %v1954
        %v2136 = vsel %vm2132, %v2130, %v1956
        %v2137 = vsel %vm2132, %v2131, %v1958
        %vm2138 = vcmask 162816
        %v2139 = vsel %vm2138, %v2133, %v1970
        %v2140 = vsel %vm2138, %v2134, %v1972
        %v2141 = vsel %vm2138, %v2135, %v1974
        %v2142 = vsel %vm2138, %v2136, %v1976
        %v2143 = vsel %vm2138, %v2137, %v1978
        %vm2144 = vcmask 179200
        %v2145 = vsel %vm2144, %v2139, %v1990
        %v2146 = vsel %vm2144, %v2140, %v1992
        %v2147 = vsel %vm2144, %v2141, %v1994
        %v2148 = vsel %vm2144, %v2142, %v1996
        %v2149 = vsel %vm2144, %v2143, %v1998
        %vm2150 = vcmask 195584
        %v2151 = vsel %vm2150, %v2145, %v2010
        %v2152 = vsel %vm2150, %v2146, %v2012
        %v2153 = vsel %vm2150, %v2147, %v2014
        %v2154 = vsel %vm2150, %v2148, %v2016
        %v2155 = vsel %vm2150, %v2149, %v2018
        %vm2156 = vcmask 211968
        %v2157 = vsel %vm2156, %v2151, %v2030
        %v2158 = vsel %vm2156, %v2152, %v2032
        %v2159 = vsel %vm2156, %v2153, %v2034
        %v2160 = vsel %vm2156, %v2154, %v2036
        %v2161 = vsel %vm2156, %v2155, %v2038
        %vm2162 = vcmask 228352
        %v2163 = vsel %vm2162, %v2157, %v2050
        %v2164 = vsel %vm2162, %v2158, %v2052
        %v2165 = vsel %vm2162, %v2159, %v2054
        %v2166 = vsel %vm2162, %v2160, %v2056
        %v2167 = vsel %vm2162, %v2161, %v2058
        %vm2168 = vcmask 244736
        %v2169 = vsel %vm2168, %v2163, %v2070
        %v2170 = vsel %vm2168, %v2164, %v2072
        %v2171 = vsel %vm2168, %v2165, %v2074
        %v2172 = vsel %vm2168, %v2166, %v2076
        %v2173 = vsel %vm2168, %v2167, %v2078
        %vm2174 = vcmask 261120
        %2175 = vst.msk [vmem:[%s118] sm:$0xff] %vm2174, %v2169
        %2176 = vst.msk [vmem:[%s118 + $0x8] sm:$0xff] %vm2174, %v2170
        %2177 = vst.msk [vmem:[%s118 + $0x10] sm:$0xff] %vm2174, %v2171
        %2178 = vst.msk [vmem:[%s118 + $0x18] sm:$0xff] %vm2174, %v2172
        %2179 = vst.msk [vmem:[%s118 + $0x20] sm:$0xff] %vm2174, %v2173
        %2185 = vrot.lane.b32.xlu0 %v2169, 32
        %v2186 = vpop.permute.xlu0 %2185
        %2187 = vrot.lane.b32.xlu0 %v2170, 32
        %v2188 = vpop.permute.xlu0 %2187
        %2189 = vrot.lane.b32.xlu0 %v2171, 32
        %v2190 = vpop.permute.xlu0 %2189
        %2191 = vrot.lane.b32.xlu0 %v2172, 32
        %v2192 = vpop.permute.xlu0 %2191
        %2193 = vrot.lane.b32.xlu0 %v2173, 32
        %v2194 = vpop.permute.xlu0 %2193
        %vm2200 = vcmask 523520
        %2201 = vst.msk [vmem:[%s118] sm:$0xff] %vm2200, %v2186
        %2202 = vst.msk [vmem:[%s118 + $0x8] sm:$0xff] %vm2200, %v2188
        %2203 = vst.msk [vmem:[%s118 + $0x10] sm:$0xff] %vm2200, %v2190
        %2204 = vst.msk [vmem:[%s118 + $0x18] sm:$0xff] %vm2200, %v2192
        %2205 = vst.msk [vmem:[%s118 + $0x20] sm:$0xff] %vm2200, %v2194
        %s2206 = sand.u32 %s46, 1
        %s2207 = sand.u32 %s46, 1
        %s2208 = smul.addr %s2207, 40
        %s2209 = scalar_lea.vmem [#allocation2], %s2208
        // Predicated region
        $region25: #{tpu_custom_call.1} parent=23 // pred_check
          %p2210 = pneg %p56
        $region26: #{tpu_custom_call.1} parent=23 // pred_check_branch
          %2212 = sbr.rel (%p2210) target = $region28
        $region27: #{tpu_custom_call.1} parent=23 // pred_region
          %s2213 = smul.u32 5, %s12
          %s2214 = ssub.s32 16, %s2213
          %p2215 = scmp.lt.s32.totalorder %s2214, 5
          %s2216 = scalar_select %p2215, %s2214, 5
          %s2217 = smul.u32 8, %s2216
          %p2218 = scmp.ne.s32.totalorder 0, %s2217
          %s2219 = smul.addr %s2213, 8
          %s2220 = scalar_lea.vmem %s1, %s2219
          // Predicated region
          $region29: #{tpu_custom_call.1} parent=27 // pred_check
            %p2221 = pneg %p2218
          $region30: #{tpu_custom_call.1} parent=27 // pred_check_branch
            %2223 = sbr.rel (%p2221) target = $region32
          $region31: #{tpu_custom_call.1} parent=27 // pred_region
            // Predicated region
            $region33: #{tpu_custom_call.1} parent=31 // pred_check
              _
            $region34: #{tpu_custom_call.1} parent=31 // pred_check_branch
              %2225 = sbr.rel (0) target = $region36
            $region35: #{tpu_custom_call.1} parent=31 // pred_region
              // Predicated region
              $region55: #{tpu_custom_call.1} parent=35 // pred_check
                _
              $region56: #{tpu_custom_call.1} parent=35 // pred_check_branch
                %2284 = sbr.rel (0) target = $region58
              $region57: #{tpu_custom_call.1} parent=35 // pred_region
                %s2285 = sdiv.u32.pop %s2216, 5
                %s2286 = srem.u32.pop %s2216, 5
                // While loop
                $region59: #{tpu_custom_call.1} parent=57 // loop_pre_header
                  _
                $region60: #{tpu_custom_call.1} parent=57 // loop_header
                  %s2288 = sphi 0, %s2290
                  %p2289 = scmp.ge.s32.totalorder %s2288, %s2285
                  %s2293 = sphi 0, %s2308
                  %s2294 = sphi %s2209, %s2311
                  %s2295 = sphi %s2220, %s2312
                $region61: #{tpu_custom_call.1} parent=57 // loop_header_branch
                  %2292 = sbr.rel (%p2289) target = $region65
                $region62: #{tpu_custom_call.1} parent=57 // loop_body
                  %v2296 = vld [vmem:[%s2294] sm:$0xff]
                  %2297 = vst [vmem:[%s2295] sm:$0xff] %v2296
                  %v2298 = vld [vmem:[%s2294 + $0x8] sm:$0xff]
                  %2299 = vst [vmem:[%s2295 + $0x8] sm:$0xff] %v2298
                  %v2300 = vld [vmem:[%s2294 + $0x10] sm:$0xff]
                  %2301 = vst [vmem:[%s2295 + $0x10] sm:$0xff] %v2300
                  %v2302 = vld [vmem:[%s2294 + $0x18] sm:$0xff]
                  %2303 = vst [vmem:[%s2295 + $0x18] sm:$0xff] %v2302
                  %v2304 = vld [vmem:[%s2294 + $0x20] sm:$0xff]
                  %2305 = vst [vmem:[%s2295 + $0x20] sm:$0xff] %v2304
                  %s2306 = sadd.s32 1, %s2293
                  %p2307 = scmp.ge.s32.totalorder %s2306, %s2285
                  %s2308 = scalar_select %p2307, 0, %s2306
                  %s2309 = smul.u32 %s2308, 40
                  %s2310 = smul.u32 %s2308, 40
                  %s2311 = scalar_lea.vmem %s2209, %s2309 [#allocation2]
                  %s2312 = scalar_lea.vmem %s2220, %s2310
                $region63: #{tpu_custom_call.1} parent=57 // loop_footer
                  %s2290 = sadd.s32 %s2288, 1
                $region64: #{tpu_custom_call.1} parent=57 // loop_footer_branch
                  %2287 = sbr.rel target = $region60
                $region65: #{tpu_custom_call.1} parent=57 // loop_exit
                  _
                %s2313 = sdiv.u32.pop %s2216, 5
                %s2314 = srem.u32.pop %s2216, 5
                %s2315 = smul.u32 %s2313, 5
                %s2316 = smul.u32 8, %s2315
                %s2317 = scalar_lea.vmem %s2209, %s2316 [#allocation2]
                %s2318 = smul.u32 8, %s2315
                %s2319 = scalar_lea.vmem %s2220, %s2318
                // While loop
                $region66: #{tpu_custom_call.1} parent=57 // loop_pre_header
                  _
                $region67: #{tpu_custom_call.1} parent=57 // loop_header
                  %s2321 = sphi 0, %s2323
                  %p2322 = scmp.ge.s32.totalorder %s2321, %s2314
                  %s2326 = sphi 0, %s2333
                  %s2327 = sphi %s2317, %s2336
                  %s2328 = sphi %s2319, %s2337
                $region68: #{tpu_custom_call.1} parent=57 // loop_header_branch
                  %2325 = sbr.rel (%p2322) target = $region72
                $region69: #{tpu_custom_call.1} parent=57 // loop_body
                  %v2329 = vld [vmem:[%s2327] sm:$0xff]
                  %2330 = vst [vmem:[%s2328] sm:$0xff] %v2329
                  %s2331 = sadd.s32 1, %s2326
                  %p2332 = scmp.ge.s32.totalorder %s2331, %s2314
                  %s2333 = scalar_select %p2332, 0, %s2331
                  %s2334 = smul.u32 %s2333, 8
                  %s2335 = smul.u32 %s2333, 8
                  %s2336 = scalar_lea.vmem %s2317, %s2334 [#allocation2]
                  %s2337 = scalar_lea.vmem %s2319, %s2335
                $region70: #{tpu_custom_call.1} parent=57 // loop_footer
                  %s2323 = sadd.s32 %s2321, 1
                $region71: #{tpu_custom_call.1} parent=57 // loop_footer_branch
                  %2320 = sbr.rel target = $region67
                $region72: #{tpu_custom_call.1} parent=57 // loop_exit
                  _
              $region58: #{tpu_custom_call.1} parent=35 // pred_fallthru
                _
              // Predicated region
              $region73: #{tpu_custom_call.1} parent=35 // pred_check
                _
              $region74: #{tpu_custom_call.1} parent=35 // pred_check_branch
                %2339 = sbr.rel target = $region76
              $region75: #{tpu_custom_call.1} parent=35 // pred_region
                _
              $region76: #{tpu_custom_call.1} parent=35 // pred_fallthru
                _
            $region36: #{tpu_custom_call.1} parent=31 // pred_fallthru
              _
            // Predicated region
            $region37: #{tpu_custom_call.1} parent=31 // pred_check
              _
            $region38: #{tpu_custom_call.1} parent=31 // pred_check_branch
              %2227 = sbr.rel target = $region40
            $region39: #{tpu_custom_call.1} parent=31 // pred_region
              %s2229 = ssub.s32 256, 1
              %s2230 = sdiv.u32.pop %s2216, 5
              %s2231 = srem.u32.pop %s2216, 5
              // While loop
              $region41: #{tpu_custom_call.1} parent=39 // loop_pre_header
                _
              $region42: #{tpu_custom_call.1} parent=39 // loop_header
                %s2233 = sphi 0, %s2235
                %p2234 = scmp.ge.s32.totalorder %s2233, %s2230
                %s2238 = sphi 0, %s2253
                %s2239 = sphi %s2209, %s2256
                %s2240 = sphi %s2220, %s2257
              $region43: #{tpu_custom_call.1} parent=39 // loop_header_branch
                %2237 = sbr.rel (%p2234) target = $region47
              $region44: #{tpu_custom_call.1} parent=39 // loop_body
                %v2241 = vld [vmem:[%s2239] sm:%s2229]
                %2242 = vst [vmem:[%s2240] sm:%s2229] %v2241
                %v2243 = vld [vmem:[%s2239 + $0x8] sm:%s2229]
                %2244 = vst [vmem:[%s2240 + $0x8] sm:%s2229] %v2243
                %v2245 = vld [vmem:[%s2239 + $0x10] sm:%s2229]
                %2246 = vst [vmem:[%s2240 + $0x10] sm:%s2229] %v2245
                %v2247 = vld [vmem:[%s2239 + $0x18] sm:%s2229]
                %2248 = vst [vmem:[%s2240 + $0x18] sm:%s2229] %v2247
                %v2249 = vld [vmem:[%s2239 + $0x20] sm:%s2229]
                %2250 = vst [vmem:[%s2240 + $0x20] sm:%s2229] %v2249
                %s2251 = sadd.s32 1, %s2238
                %p2252 = scmp.ge.s32.totalorder %s2251, %s2230
                %s2253 = scalar_select %p2252, 0, %s2251
                %s2254 = smul.u32 %s2253, 40
                %s2255 = smul.u32 %s2253, 40
                %s2256 = scalar_lea.vmem %s2209, %s2254 [#allocation2]
                %s2257 = scalar_lea.vmem %s2220, %s2255
              $region45: #{tpu_custom_call.1} parent=39 // loop_footer
                %s2235 = sadd.s32 %s2233, 1
              $region46: #{tpu_custom_call.1} parent=39 // loop_footer_branch
                %2232 = sbr.rel target = $region42
              $region47: #{tpu_custom_call.1} parent=39 // loop_exit
                _
              %s2258 = sdiv.u32.pop %s2216, 5
              %s2259 = srem.u32.pop %s2216, 5
              %s2260 = smul.u32 %s2258, 5
              %s2261 = smul.u32 8, %s2260
              %s2262 = scalar_lea.vmem %s2209, %s2261 [#allocation2]
              %s2263 = smul.u32 8, %s2260
              %s2264 = scalar_lea.vmem %s2220, %s2263
              // While loop
              $region48: #{tpu_custom_call.1} parent=39 // loop_pre_header
                _
              $region49: #{tpu_custom_call.1} parent=39 // loop_header
                %s2266 = sphi 0, %s2268
                %p2267 = scmp.ge.s32.totalorder %s2266, %s2259
                %s2271 = sphi 0, %s2278
                %s2272 = sphi %s2262, %s2281
                %s2273 = sphi %s2264, %s2282
              $region50: #{tpu_custom_call.1} parent=39 // loop_header_branch
                %2270 = sbr.rel (%p2267) target = $region54
              $region51: #{tpu_custom_call.1} parent=39 // loop_body
                %v2274 = vld [vmem:[%s2272] sm:%s2229]
                %2275 = vst [vmem:[%s2273] sm:%s2229] %v2274
                %s2276 = sadd.s32 1, %s2271
                %p2277 = scmp.ge.s32.totalorder %s2276, %s2259
                %s2278 = scalar_select %p2277, 0, %s2276
                %s2279 = smul.u32 %s2278, 8
                %s2280 = smul.u32 %s2278, 8
                %s2281 = scalar_lea.vmem %s2262, %s2279 [#allocation2]
                %s2282 = scalar_lea.vmem %s2264, %s2280
              $region52: #{tpu_custom_call.1} parent=39 // loop_footer
                %s2268 = sadd.s32 %s2266, 1
              $region53: #{tpu_custom_call.1} parent=39 // loop_footer_branch
                %2265 = sbr.rel target = $region49
              $region54: #{tpu_custom_call.1} parent=39 // loop_exit
                _
            $region40: #{tpu_custom_call.1} parent=31 // pred_fallthru
              _
          $region32: #{tpu_custom_call.1} parent=27 // pred_fallthru
            _
          %2340 = vnop
        $region28: #{tpu_custom_call.1} parent=23 // pred_fallthru
          _
      $region24: #{tpu_custom_call.1} parent=5 // pred_fallthru
        _
      %p2341 = scmp.le.s32.totalorder 2, %s7
      // Predicated region
      $region77: #{tpu_custom_call.1} parent=5 // pred_check
        %p2342 = pneg %p2341
      $region78: #{tpu_custom_call.1} parent=5 // pred_check_branch
        %2344 = sbr.rel (%p2342) target = $region80
      $region79: #{tpu_custom_call.1} parent=5 // pred_region
        %s2345 = ssub.s32 %s7, 2
        // Predicated region
        $region81: #{tpu_custom_call.1} parent=79 // pred_check
          %p2346 = pneg %p62
        $region82: #{tpu_custom_call.1} parent=79 // pred_check_branch
          %2348 = sbr.rel (%p2346) target = $region84
        $region83: #{tpu_custom_call.1} parent=79 // pred_region
          %s2349 = sand.u32 %s47, 1
          %s2350 = sand.u32 %s47, 1
          %s2351 = smul.addr %s2350, 40
          %s2352 = scalar_lea.vmem [#allocation2], %s2351
        $region84: #{tpu_custom_call.1} parent=79 // pred_fallthru
          _
      $region80: #{tpu_custom_call.1} parent=5 // pred_fallthru
        _
    $region6: #{tpu_custom_call.1} parent=1 // loop_footer
      %s11 = sadd.s32 1, %s7
    $region7: #{tpu_custom_call.1} parent=1 // loop_footer_branch
      %6 = sbr.rel target = $region3
    $region8: #{tpu_custom_call.1} parent=1 // loop_exit
      _

</llo_original>
